<compile_context>
chip_gen: v7x
topology: tpu7x:2x2x1
jax: 0.10.0
libtpu: 0.0.40
codegen_flags: <defaults>
</compile_context>

<pallas_src>
import jax
import jax.numpy as jnp
from jax import lax
from jax.experimental import pallas as pl
from jax.experimental.pallas import tpu as pltpu

INPUT_SIZE = 3
HIDDEN_SIZE = 64
NUM_LAYERS = 2      # hard-wired: 2 stacked LSTM layers (module default)
OUT_PAD = 128       # lane-dense FC output width (>= INPUT_SIZE)


def _make_kernel(T, TB, H):
    """Fused skewed 2-layer LSTM + FC kernel for one batch tile of TB rows."""

    def kernel(x_ref, wih0b_ref, wbig_ref, bb_ref, wfcb_ref, bfcb_ref,
               out_ref, pre, hseq):
        # ---- hoisted layer-0 input projection for all T steps ---------------
        # pre rows [t*TB : (t+1)*TB] hold, in fused column layout,
        #   layer-0 cols: x_t @ W_ih0 + b0     layer-1 cols: b1
        bb = bb_ref[...]                                     # (1, 8H)
        pre[...] = (jnp.dot(x_ref[...], wih0b_ref[...],
                            preferred_element_type=jnp.float32) + bb)

        wbig = wbig_ref[...]                                 # (2H, 8H), load once

        # packed state: lanes [0:H] = layer 0, [H:2H] = layer 1
        h = jnp.zeros((TB, 2 * H), jnp.float32)
        c = jnp.zeros((TB, 2 * H), jnp.float32)
        lane = lax.broadcasted_iota(jnp.int32, (TB, 2 * H), 1)
        is_l0 = lane < H

        # ---- fused skewed recurrence: T+1 combined steps ---------------------
        # step s: layer-0 advances to time s (s < T), layer-1 to time s-1 (s >= 1)
        # TODO(synk): for large T (>~16) switch this static unroll to
        # lax.fori_loop(..., unroll=2..4) carrying (h, c) to bound vreg pressure.
        for s in range(T + 1):
            if s == 0:
                gsum = pre[pl.ds(0, TB), :]                  # h == 0 -> skip matmul
            elif s < T:
                gsum = (jnp.dot(h, wbig, preferred_element_type=jnp.float32)
                        + pre[pl.ds(s * TB, TB), :])
            else:                                            # s == T: no x_T
                gsum = jnp.dot(h, wbig,
                               preferred_element_type=jnp.float32) + bb

            # fused gate columns: [i0 i1 | f0 f1 | o0 o1 | g0 g1]
            ifo = jax.nn.sigmoid(gsum[:, :6 * H])            # 3 full vregs
            gg = jnp.tanh(gsum[:, 6 * H:])                   # 1 full vreg
            i_g = ifo[:, 0 * H:2 * H]
            f_g = ifo[:, 2 * H:4 * H]
            o_g = ifo[:, 4 * H:6 * H]
            c = f_g * c + i_g * gg                           # packed [c0|c1]
            h = o_g * jnp.tanh(c)                            # packed [h0|h1]

            if s == 0:
                # layer 1 has not started yet: keep its state half at zero
                h = jnp.where(is_l0, h, 0.0)
                c = jnp.where(is_l0, c, 0.0)
            else:
                # right half is h1_{s-1}; left half (h0 at a shifted time) is
                # ignored by the FC head (its wfc rows are zero), so store the
                # full 128-lane row unmasked.
                hseq[pl.ds((s - 1) * TB, TB), :] = h

        # ---- FC head: one lane-dense matmul + one unmasked store ------------
        y = (jnp.dot(hseq[...], wfcb_ref[...],
                     preferred_element_type=jnp.float32) + bfcb_ref[...])
        out_ref[...] = y.astype(out_ref.dtype)

    return kernel


def init_params(key, input_size=INPUT_SIZE, hidden_size=HIDDEN_SIZE):
    """Deterministic init mimicking PyTorch's U(-1/sqrt(H), 1/sqrt(H)).

    Returned weights are pre-transposed to (in_dim, out_dim); gate column
    order is the PyTorch order [i, f, g, o]."""
    H, I = hidden_size, input_size
    klstm = 1.0 / jnp.sqrt(jnp.float32(H))
    kfc = 1.0 / jnp.sqrt(jnp.float32(H))
    keys = jax.random.split(key, 12)

    def u(k, shape, bound):
        return jax.random.uniform(k, shape, jnp.float32, -bound, bound)

    w_ih0 = u(keys[0], (4 * H, I), klstm)
    w_hh0 = u(keys[1], (4 * H, H), klstm)
    b_ih0 = u(keys[2], (4 * H,), klstm)
    b_hh0 = u(keys[3], (4 * H,), klstm)
    w_ih1 = u(keys[4], (4 * H, H), klstm)
    w_hh1 = u(keys[5], (4 * H, H), klstm)
    b_ih1 = u(keys[6], (4 * H,), klstm)
    b_hh1 = u(keys[7], (4 * H,), klstm)
    w_fc = u(keys[8], (I, H), kfc)
    b_fc = u(keys[9], (I,), kfc)

    return dict(
        wih0=w_ih0.T,                               # (I, 4H)
        whh0=w_hh0.T,                               # (H, 4H)
        b0=(b_ih0 + b_hh0).reshape(1, 4 * H),       # (1, 4H)
        wih1=w_ih1.T,                               # (H, 4H)
        whh1=w_hh1.T,                               # (H, 4H)
        b1=(b_ih1 + b_hh1).reshape(1, 4 * H),       # (1, 4H)
        wfc=w_fc.T,                                 # (H, I)
        bfc=b_fc.reshape(1, I),                     # (1, I)
    )


def _place_gates(w, layer):
    """(in, 4H) PyTorch-order cols [i,f,g,o] -> (in, 8H) fused cols
    [i0 i1 f0 f1 o0 o1 g0 g1], zeros in the other layer's columns."""
    i, f, g, o = jnp.split(w, 4, axis=1)
    z = jnp.zeros_like(i)
    if layer == 0:
        blocks = [i, z, f, z, o, z, g, z]
    else:
        blocks = [z, i, z, f, z, o, z, g]
    return jnp.concatenate(blocks, axis=1)


def _build_fused_operands(params):
    H, I = HIDDEN_SIZE, INPUT_SIZE
    wih0b = _place_gates(params["wih0"], 0)                              # (I, 8H)
    wbig = jnp.concatenate(
        [_place_gates(params["whh0"], 0) + _place_gates(params["wih1"], 1),
         _place_gates(params["whh1"], 1)], axis=0)                       # (2H, 8H)
    bb = _place_gates(params["b0"], 0) + _place_gates(params["b1"], 1)   # (1, 8H)
    wfcb = jnp.zeros((2 * H, OUT_PAD), jnp.float32).at[H:, :I].set(params["wfc"])
    bfcb = jnp.zeros((1, OUT_PAD), jnp.float32).at[:, :I].set(params["bfc"])
    return wih0b, wbig, bb, wfcb, bfcb


def _pick_batch_tile(B, T):
    """Batch tile: up to 256 rows (MXU fill) while keeping per-tile scratch
    (pre + hseq, ~2.5 KiB/row) around <= 8 MiB — safe for the default scoped
    VMEM limit on v5e/v6e and for v7x's 64 MiB physical VMEM."""
    bytes_per_row = (8 * HIDDEN_SIZE + 2 * HIDDEN_SIZE) * 4
    max_rows = (8 * 1024 * 1024) // bytes_per_row
    tb = 256
    while tb > 8 and T * tb > max_rows:
        tb //= 2
    if B < tb:
        tb = max(8, ((B + 7) // 8) * 8)
    return tb


@jax.jit
def lstm_forward(x, params):
    """x: (B, T, I) float32 -> (B, T, I) float32 (same as the PyTorch module)."""
    B, T, I = x.shape
    H = HIDDEN_SIZE
    TB = _pick_batch_tile(B, T)
    Bpad = ((B + TB - 1) // TB) * TB
    nb = Bpad // TB

    # Batch-tile / time-major plumbing: block n holds row t*TB + b for batch
    # element n*TB + b at time t, so every per-step slice inside the kernel is
    # a contiguous, sublane-aligned (TB, .) slab.
    x_p = jnp.pad(x, ((0, Bpad - B), (0, 0), (0, 0)))                 # (Bpad, T, I)
    x_p = x_p.reshape(nb, TB, T, I).transpose(0, 2, 1, 3).reshape(nb, T * TB, I)

    wih0b, wbig, bb, wfcb, bfcb = _build_fused_operands(params)

    kernel = _make_kernel(T, TB, H)
    out2 = pl.pallas_call(
        kernel,
        out_shape=jax.ShapeDtypeStruct((nb, T * TB, OUT_PAD), x.dtype),
        grid_spec=pltpu.PrefetchScalarGridSpec(
            num_scalar_prefetch=0,
            grid=(nb,),
            in_specs=[
                pl.BlockSpec((None, T * TB, I), lambda i: (i, 0, 0)),      # x tile
                pl.BlockSpec((INPUT_SIZE, 8 * H), lambda i: (0, 0)),       # wih0b
                pl.BlockSpec((2 * H, 8 * H), lambda i: (0, 0)),            # wbig
                pl.BlockSpec((1, 8 * H), lambda i: (0, 0)),                # bias
                pl.BlockSpec((2 * H, OUT_PAD), lambda i: (0, 0)),          # wfcb
                pl.BlockSpec((1, OUT_PAD), lambda i: (0, 0)),              # bfcb
            ],
            out_specs=pl.BlockSpec((None, T * TB, OUT_PAD), lambda i: (i, 0, 0)),
            scratch_shapes=[
                pltpu.VMEM((T * TB, 8 * H), jnp.float32),   # hoisted gate pre-acts
                pltpu.VMEM((T * TB, 2 * H), jnp.float32),   # packed [h0|h1] sequence
            ],
        ),
        compiler_params=pltpu.CompilerParams(
            dimension_semantics=("parallel",)),
    )(x_p, wih0b, wbig, bb, wfcb, bfcb)

    out = out2.reshape(nb, T, TB, OUT_PAD).transpose(0, 2, 1, 3)
    out = out.reshape(Bpad, T, OUT_PAD)[:B, :, :I]                    # drop padding
    return out


def lstm_forward_ref(x, params):
    """Pure-JAX reference implementing the same PyTorch semantics."""
    B, T, I = x.shape
    H = HIDDEN_SIZE

    def run_layer(seq, wih, whh, b):
        def step(carry, x_t):
            h, c = carry
            gates = x_t @ wih + h @ whh + b
            i = jax.nn.sigmoid(gates[:, 0 * H:1 * H])
            f = jax.nn.sigmoid(gates[:, 1 * H:2 * H])
            g = jnp.tanh(gates[:, 2 * H:3 * H])
            o = jax.nn.sigmoid(gates[:, 3 * H:4 * H])
            c = f * c + i * g
            h = o * jnp.tanh(c)
            return (h, c), h
        init = (jnp.zeros((B, H), jnp.float32), jnp.zeros((B, H), jnp.float32))
        _, hs = lax.scan(step, init, jnp.transpose(seq, (1, 0, 2)))
        return jnp.transpose(hs, (1, 0, 2))

    h1 = run_layer(x, params["wih0"], params["whh0"], params["b0"])
    h2 = run_layer(h1, params["wih1"], params["whh1"], params["b1"])
    return h2 @ params["wfc"] + params["bfc"]


if __name__ == "__main__":
    key = jax.random.PRNGKey(0)
    pkey, xkey = jax.random.split(key)

    B, T, I = 2, 8, INPUT_SIZE
    params = init_params(pkey)
    x = jax.random.normal(xkey, (B, T, I), jnp.float32)

    out = lstm_forward(x, params)
    out = jax.block_until_ready(out)

    ref = lstm_forward_ref(x, params)
    assert out.shape == (B, T, I)
    assert jnp.allclose(out, ref, atol=1e-4, rtol=1e-4)

    print("KERNEL_OK")
</pallas_src>

<mosaic_0001>
module attributes {stable_mosaic.version = 11 : i64} {
  func.func @kernel(%arg0: i32, %arg1: memref<1x64x3xf32, #tpu.memory_space<vmem>>, %arg2: memref<3x512xf32, #tpu.memory_space<vmem>>, %arg3: memref<128x512xf32, #tpu.memory_space<vmem>>, %arg4: memref<1x512xf32, #tpu.memory_space<vmem>>, %arg5: memref<128x128xf32, #tpu.memory_space<vmem>>, %arg6: memref<1x128xf32, #tpu.memory_space<vmem>>, %arg7: memref<1x64x128xf32, #tpu.memory_space<vmem>>, %arg8: memref<64x512xf32, #tpu.memory_space<vmem>>, %arg9: memref<64x128xf32, #tpu.memory_space<vmem>>) attributes {dimension_semantics = [#tpu.dimension_semantics<parallel>], iteration_bounds = array<i64: 1>, scalar_prefetch = 0 : i64, scratch_operands = 2 : i64, tpu.core_type = #tpu.core_type<tc>, window_params = [{transform_indices = @transform_0, window_bounds = array<i64: 1, 64, 3>}, {pipeline_mode = #tpu.pipeline_mode<synchronous>, transform_indices = @transform_1, window_bounds = array<i64: 3, 512>}, {pipeline_mode = #tpu.pipeline_mode<synchronous>, transform_indices = @transform_2, window_bounds = array<i64: 128, 512>}, {pipeline_mode = #tpu.pipeline_mode<synchronous>, transform_indices = @transform_3, window_bounds = array<i64: 1, 512>}, {pipeline_mode = #tpu.pipeline_mode<synchronous>, transform_indices = @transform_4, window_bounds = array<i64: 128, 128>}, {pipeline_mode = #tpu.pipeline_mode<synchronous>, transform_indices = @transform_5, window_bounds = array<i64: 1, 128>}, {transform_indices = @transform_6, window_bounds = array<i64: 1, 64, 128>}]} {
    %c0 = arith.constant 0 : index
    %c0_0 = arith.constant 0 : index
    %0 = vector.load %arg4[%c0, %c0_0] : memref<1x512xf32, #tpu.memory_space<vmem>>, vector<1x512xf32>
    %c0_1 = arith.constant 0 : index
    %c0_2 = arith.constant 0 : index
    %c0_3 = arith.constant 0 : index
    %1 = vector.load %arg1[%c0_1, %c0_2, %c0_3] : memref<1x64x3xf32, #tpu.memory_space<vmem>>, vector<1x64x3xf32>
    %2 = vector.shape_cast %1 : vector<1x64x3xf32> to vector<64x3xf32>
    %c0_4 = arith.constant 0 : index
    %c0_5 = arith.constant 0 : index
    %3 = vector.load %arg2[%c0_4, %c0_5] : memref<3x512xf32, #tpu.memory_space<vmem>>, vector<3x512xf32>
    %cst = arith.constant dense<0.000000e+00> : vector<64x512xf32>
    %4 = tpu.matmul %2, %3, %cst {dimension_numbers = #tpu.dot_dimension_numbers<[1], [0], [0], [1], [0, 0, 1, 1], [], []>} : vector<64x3xf32>, vector<3x512xf32>, vector<64x512xf32> -> vector<64x512xf32>
    %5 = vector.broadcast %0 : vector<1x512xf32> to vector<64x512xf32>
    %6 = arith.addf %4, %5 : vector<64x512xf32>
    %c0_6 = arith.constant 0 : index
    %c0_7 = arith.constant 0 : index
    %7 = vector.load %arg8[%c0_6, %c0_7] : memref<64x512xf32, #tpu.memory_space<vmem>>, vector<64x512xf32>
    tpu.vector_store %arg8[%c0_6, %c0_7], %6 {strides = array<i32>} : memref<64x512xf32, #tpu.memory_space<vmem>>, vector<64x512xf32>,
    %c0_8 = arith.constant 0 : index
    %c0_9 = arith.constant 0 : index
    %8 = vector.load %arg3[%c0_8, %c0_9] : memref<128x512xf32, #tpu.memory_space<vmem>>, vector<128x512xf32>
    %cst_10 = arith.constant 0.000000e+00 : f32
    %9 = vector.broadcast %cst_10 : f32 to vector<8x128xf32>
    %10 = tpu.iota {dimensions = array<i32: 1>} : vector<8x128xi32>
    %c64_i32 = arith.constant 64 : i32
    %11 = vector.broadcast %c64_i32 : i32 to vector<8x128xi32>
    %12 = arith.cmpi slt, %10, %11 : vector<8x128xi32>
    %c0_11 = arith.constant 0 : index
    %c0_12 = arith.constant 0 : index
    %13 = vector.load %arg8[%c0_11, %c0_12] : memref<64x512xf32, #tpu.memory_space<vmem>>, vector<8x512xf32>
    %14 = vector.extract_strided_slice %13 {offsets = [0, 0], sizes = [8, 384], strides = [1, 1]} : vector<8x512xf32> to vector<8x384xf32>
    %15 = arith.negf %14 : vector<8x384xf32>
    %16 = math.exp %15 : vector<8x384xf32>
    %cst_13 = arith.constant 1.000000e+00 : f32
    %17 = vector.broadcast %cst_13 : f32 to vector<8x384xf32>
    %18 = arith.addf %17, %16 : vector<8x384xf32>
    %19 = arith.divf %17, %18 : vector<8x384xf32>
    %20 = vector.extract_strided_slice %13 {offsets = [0, 384], sizes = [8, 128], strides = [1, 1]} : vector<8x512xf32> to vector<8x128xf32>
    %21 = math.tanh %20 : vector<8x128xf32>
    %22 = vector.extract_strided_slice %19 {offsets = [0, 0], sizes = [8, 128], strides = [1, 1]} : vector<8x384xf32> to vector<8x128xf32>
    %23 = vector.extract_strided_slice %19 {offsets = [0, 128], sizes = [8, 128], strides = [1, 1]} : vector<8x384xf32> to vector<8x128xf32>
    %24 = vector.extract_strided_slice %19 {offsets = [0, 256], sizes = [8, 128], strides = [1, 1]} : vector<8x384xf32> to vector<8x128xf32>
    %25 = arith.mulf %23, %9 : vector<8x128xf32>
    %26 = arith.mulf %22, %21 : vector<8x128xf32>
    %27 = arith.addf %25, %26 : vector<8x128xf32>
    %28 = math.tanh %27 : vector<8x128xf32>
    %29 = arith.mulf %24, %28 : vector<8x128xf32>
    %cst_14 = arith.constant 0.000000e+00 : f32
    %30 = vector.broadcast %cst_14 : f32 to vector<8x128xf32>
    %31 = arith.select %12, %29, %30 : vector<8x128xi1>, vector<8x128xf32>
    %cst_15 = arith.constant 0.000000e+00 : f32
    %32 = vector.broadcast %cst_15 : f32 to vector<8x128xf32>
    %33 = arith.select %12, %27, %32 : vector<8x128xi1>, vector<8x128xf32>
    %cst_16 = arith.constant dense<0.000000e+00> : vector<8x512xf32>
    %34 = tpu.matmul %31, %8, %cst_16 {dimension_numbers = #tpu.dot_dimension_numbers<[1], [0], [0], [1], [0, 0, 1, 1], [], []>} : vector<8x128xf32>, vector<128x512xf32>, vector<8x512xf32> -> vector<8x512xf32>
    %c8 = arith.constant 8 : index
    %c0_17 = arith.constant 0 : index
    %35 = vector.load %arg8[%c8, %c0_17] : memref<64x512xf32, #tpu.memory_space<vmem>>, vector<8x512xf32>
    %36 = arith.addf %34, %35 : vector<8x512xf32>
    %37 = vector.extract_strided_slice %36 {offsets = [0, 0], sizes = [8, 384], strides = [1, 1]} : vector<8x512xf32> to vector<8x384xf32>
    %38 = arith.negf %37 : vector<8x384xf32>
    %39 = math.exp %38 : vector<8x384xf32>
    %cst_18 = arith.constant 1.000000e+00 : f32
    %40 = vector.broadcast %cst_18 : f32 to vector<8x384xf32>
    %41 = arith.addf %40, %39 : vector<8x384xf32>
    %42 = arith.divf %40, %41 : vector<8x384xf32>
    %43 = vector.extract_strided_slice %36 {offsets = [0, 384], sizes = [8, 128], strides = [1, 1]} : vector<8x512xf32> to vector<8x128xf32>
    %44 = math.tanh %43 : vector<8x128xf32>
    %45 = vector.extract_strided_slice %42 {offsets = [0, 0], sizes = [8, 128], strides = [1, 1]} : vector<8x384xf32> to vector<8x128xf32>
    %46 = vector.extract_strided_slice %42 {offsets = [0, 128], sizes = [8, 128], strides = [1, 1]} : vector<8x384xf32> to vector<8x128xf32>
    %47 = vector.extract_strided_slice %42 {offsets = [0, 256], sizes = [8, 128], strides = [1, 1]} : vector<8x384xf32> to vector<8x128xf32>
    %48 = arith.mulf %46, %33 : vector<8x128xf32>
    %49 = arith.mulf %45, %44 : vector<8x128xf32>
    %50 = arith.addf %48, %49 : vector<8x128xf32>
    %51 = math.tanh %50 : vector<8x128xf32>
    %52 = arith.mulf %47, %51 : vector<8x128xf32>
    %c0_19 = arith.constant 0 : index
    %c0_20 = arith.constant 0 : index
    %53 = vector.load %arg9[%c0_19, %c0_20] : memref<64x128xf32, #tpu.memory_space<vmem>>, vector<8x128xf32>
    tpu.vector_store %arg9[%c0_19, %c0_20], %52 {strides = array<i32>} : memref<64x128xf32, #tpu.memory_space<vmem>>, vector<8x128xf32>,
    %cst_21 = arith.constant dense<0.000000e+00> : vector<8x512xf32>
    %54 = tpu.matmul %52, %8, %cst_21 {dimension_numbers = #tpu.dot_dimension_numbers<[1], [0], [0], [1], [0, 0, 1, 1], [], []>} : vector<8x128xf32>, vector<128x512xf32>, vector<8x512xf32> -> vector<8x512xf32>
    %c16 = arith.constant 16 : index
    %c0_22 = arith.constant 0 : index
    %55 = vector.load %arg8[%c16, %c0_22] : memref<64x512xf32, #tpu.memory_space<vmem>>, vector<8x512xf32>
    %56 = arith.addf %54, %55 : vector<8x512xf32>
    %57 = vector.extract_strided_slice %56 {offsets = [0, 0], sizes = [8, 384], strides = [1, 1]} : vector<8x512xf32> to vector<8x384xf32>
    %58 = arith.negf %57 : vector<8x384xf32>
    %59 = math.exp %58 : vector<8x384xf32>
    %cst_23 = arith.constant 1.000000e+00 : f32
    %60 = vector.broadcast %cst_23 : f32 to vector<8x384xf32>
    %61 = arith.addf %60, %59 : vector<8x384xf32>
    %62 = arith.divf %60, %61 : vector<8x384xf32>
    %63 = vector.extract_strided_slice %56 {offsets = [0, 384], sizes = [8, 128], strides = [1, 1]} : vector<8x512xf32> to vector<8x128xf32>
    %64 = math.tanh %63 : vector<8x128xf32>
    %65 = vector.extract_strided_slice %62 {offsets = [0, 0], sizes = [8, 128], strides = [1, 1]} : vector<8x384xf32> to vector<8x128xf32>
    %66 = vector.extract_strided_slice %62 {offsets = [0, 128], sizes = [8, 128], strides = [1, 1]} : vector<8x384xf32> to vector<8x128xf32>
    %67 = vector.extract_strided_slice %62 {offsets = [0, 256], sizes = [8, 128], strides = [1, 1]} : vector<8x384xf32> to vector<8x128xf32>
    %68 = arith.mulf %66, %50 : vector<8x128xf32>
    %69 = arith.mulf %65, %64 : vector<8x128xf32>
    %70 = arith.addf %68, %69 : vector<8x128xf32>
    %71 = math.tanh %70 : vector<8x128xf32>
    %72 = arith.mulf %67, %71 : vector<8x128xf32>
    %c8_24 = arith.constant 8 : index
    %c0_25 = arith.constant 0 : index
    %73 = vector.load %arg9[%c8_24, %c0_25] : memref<64x128xf32, #tpu.memory_space<vmem>>, vector<8x128xf32>
    tpu.vector_store %arg9[%c8_24, %c0_25], %72 {strides = array<i32>} : memref<64x128xf32, #tpu.memory_space<vmem>>, vector<8x128xf32>,
    %cst_26 = arith.constant dense<0.000000e+00> : vector<8x512xf32>
    %74 = tpu.matmul %72, %8, %cst_26 {dimension_numbers = #tpu.dot_dimension_numbers<[1], [0], [0], [1], [0, 0, 1, 1], [], []>} : vector<8x128xf32>, vector<128x512xf32>, vector<8x512xf32> -> vector<8x512xf32>
    %c24 = arith.constant 24 : index
    %c0_27 = arith.constant 0 : index
    %75 = vector.load %arg8[%c24, %c0_27] : memref<64x512xf32, #tpu.memory_space<vmem>>, vector<8x512xf32>
    %76 = arith.addf %74, %75 : vector<8x512xf32>
    %77 = vector.extract_strided_slice %76 {offsets = [0, 0], sizes = [8, 384], strides = [1, 1]} : vector<8x512xf32> to vector<8x384xf32>
    %78 = arith.negf %77 : vector<8x384xf32>
    %79 = math.exp %78 : vector<8x384xf32>
    %cst_28 = arith.constant 1.000000e+00 : f32
    %80 = vector.broadcast %cst_28 : f32 to vector<8x384xf32>
    %81 = arith.addf %80, %79 : vector<8x384xf32>
    %82 = arith.divf %80, %81 : vector<8x384xf32>
    %83 = vector.extract_strided_slice %76 {offsets = [0, 384], sizes = [8, 128], strides = [1, 1]} : vector<8x512xf32> to vector<8x128xf32>
    %84 = math.tanh %83 : vector<8x128xf32>
    %85 = vector.extract_strided_slice %82 {offsets = [0, 0], sizes = [8, 128], strides = [1, 1]} : vector<8x384xf32> to vector<8x128xf32>
    %86 = vector.extract_strided_slice %82 {offsets = [0, 128], sizes = [8, 128], strides = [1, 1]} : vector<8x384xf32> to vector<8x128xf32>
    %87 = vector.extract_strided_slice %82 {offsets = [0, 256], sizes = [8, 128], strides = [1, 1]} : vector<8x384xf32> to vector<8x128xf32>
    %88 = arith.mulf %86, %70 : vector<8x128xf32>
    %89 = arith.mulf %85, %84 : vector<8x128xf32>
    %90 = arith.addf %88, %89 : vector<8x128xf32>
    %91 = math.tanh %90 : vector<8x128xf32>
    %92 = arith.mulf %87, %91 : vector<8x128xf32>
    %c16_29 = arith.constant 16 : index
    %c0_30 = arith.constant 0 : index
    %93 = vector.load %arg9[%c16_29, %c0_30] : memref<64x128xf32, #tpu.memory_space<vmem>>, vector<8x128xf32>
    tpu.vector_store %arg9[%c16_29, %c0_30], %92 {strides = array<i32>} : memref<64x128xf32, #tpu.memory_space<vmem>>, vector<8x128xf32>,
    %cst_31 = arith.constant dense<0.000000e+00> : vector<8x512xf32>
    %94 = tpu.matmul %92, %8, %cst_31 {dimension_numbers = #tpu.dot_dimension_numbers<[1], [0], [0], [1], [0, 0, 1, 1], [], []>} : vector<8x128xf32>, vector<128x512xf32>, vector<8x512xf32> -> vector<8x512xf32>
    %c32 = arith.constant 32 : index
    %c0_32 = arith.constant 0 : index
    %95 = vector.load %arg8[%c32, %c0_32] : memref<64x512xf32, #tpu.memory_space<vmem>>, vector<8x512xf32>
    %96 = arith.addf %94, %95 : vector<8x512xf32>
    %97 = vector.extract_strided_slice %96 {offsets = [0, 0], sizes = [8, 384], strides = [1, 1]} : vector<8x512xf32> to vector<8x384xf32>
    %98 = arith.negf %97 : vector<8x384xf32>
    %99 = math.exp %98 : vector<8x384xf32>
    %cst_33 = arith.constant 1.000000e+00 : f32
    %100 = vector.broadcast %cst_33 : f32 to vector<8x384xf32>
    %101 = arith.addf %100, %99 : vector<8x384xf32>
    %102 = arith.divf %100, %101 : vector<8x384xf32>
    %103 = vector.extract_strided_slice %96 {offsets = [0, 384], sizes = [8, 128], strides = [1, 1]} : vector<8x512xf32> to vector<8x128xf32>
    %104 = math.tanh %103 : vector<8x128xf32>
    %105 = vector.extract_strided_slice %102 {offsets = [0, 0], sizes = [8, 128], strides = [1, 1]} : vector<8x384xf32> to vector<8x128xf32>
    %106 = vector.extract_strided_slice %102 {offsets = [0, 128], sizes = [8, 128], strides = [1, 1]} : vector<8x384xf32> to vector<8x128xf32>
    %107 = vector.extract_strided_slice %102 {offsets = [0, 256], sizes = [8, 128], strides = [1, 1]} : vector<8x384xf32> to vector<8x128xf32>
    %108 = arith.mulf %106, %90 : vector<8x128xf32>
    %109 = arith.mulf %105, %104 : vector<8x128xf32>
    %110 = arith.addf %108, %109 : vector<8x128xf32>
    %111 = math.tanh %110 : vector<8x128xf32>
    %112 = arith.mulf %107, %111 : vector<8x128xf32>
    %c24_34 = arith.constant 24 : index
    %c0_35 = arith.constant 0 : index
    %113 = vector.load %arg9[%c24_34, %c0_35] : memref<64x128xf32, #tpu.memory_space<vmem>>, vector<8x128xf32>
    tpu.vector_store %arg9[%c24_34, %c0_35], %112 {strides = array<i32>} : memref<64x128xf32, #tpu.memory_space<vmem>>, vector<8x128xf32>,
    %cst_36 = arith.constant dense<0.000000e+00> : vector<8x512xf32>
    %114 = tpu.matmul %112, %8, %cst_36 {dimension_numbers = #tpu.dot_dimension_numbers<[1], [0], [0], [1], [0, 0, 1, 1], [], []>} : vector<8x128xf32>, vector<128x512xf32>, vector<8x512xf32> -> vector<8x512xf32>
    %c40 = arith.constant 40 : index
    %c0_37 = arith.constant 0 : index
    %115 = vector.load %arg8[%c40, %c0_37] : memref<64x512xf32, #tpu.memory_space<vmem>>, vector<8x512xf32>
    %116 = arith.addf %114, %115 : vector<8x512xf32>
    %117 = vector.extract_strided_slice %116 {offsets = [0, 0], sizes = [8, 384], strides = [1, 1]} : vector<8x512xf32> to vector<8x384xf32>
    %118 = arith.negf %117 : vector<8x384xf32>
    %119 = math.exp %118 : vector<8x384xf32>
    %cst_38 = arith.constant 1.000000e+00 : f32
    %120 = vector.broadcast %cst_38 : f32 to vector<8x384xf32>
    %121 = arith.addf %120, %119 : vector<8x384xf32>
    %122 = arith.divf %120, %121 : vector<8x384xf32>
    %123 = vector.extract_strided_slice %116 {offsets = [0, 384], sizes = [8, 128], strides = [1, 1]} : vector<8x512xf32> to vector<8x128xf32>
    %124 = math.tanh %123 : vector<8x128xf32>
    %125 = vector.extract_strided_slice %122 {offsets = [0, 0], sizes = [8, 128], strides = [1, 1]} : vector<8x384xf32> to vector<8x128xf32>
    %126 = vector.extract_strided_slice %122 {offsets = [0, 128], sizes = [8, 128], strides = [1, 1]} : vector<8x384xf32> to vector<8x128xf32>
    %127 = vector.extract_strided_slice %122 {offsets = [0, 256], sizes = [8, 128], strides = [1, 1]} : vector<8x384xf32> to vector<8x128xf32>
    %128 = arith.mulf %126, %110 : vector<8x128xf32>
    %129 = arith.mulf %125, %124 : vector<8x128xf32>
    %130 = arith.addf %128, %129 : vector<8x128xf32>
    %131 = math.tanh %130 : vector<8x128xf32>
    %132 = arith.mulf %127, %131 : vector<8x128xf32>
    %c32_39 = arith.constant 32 : index
    %c0_40 = arith.constant 0 : index
    %133 = vector.load %arg9[%c32_39, %c0_40] : memref<64x128xf32, #tpu.memory_space<vmem>>, vector<8x128xf32>
    tpu.vector_store %arg9[%c32_39, %c0_40], %132 {strides = array<i32>} : memref<64x128xf32, #tpu.memory_space<vmem>>, vector<8x128xf32>,
    %cst_41 = arith.constant dense<0.000000e+00> : vector<8x512xf32>
    %134 = tpu.matmul %132, %8, %cst_41 {dimension_numbers = #tpu.dot_dimension_numbers<[1], [0], [0], [1], [0, 0, 1, 1], [], []>} : vector<8x128xf32>, vector<128x512xf32>, vector<8x512xf32> -> vector<8x512xf32>
    %c48 = arith.constant 48 : index
    %c0_42 = arith.constant 0 : index
    %135 = vector.load %arg8[%c48, %c0_42] : memref<64x512xf32, #tpu.memory_space<vmem>>, vector<8x512xf32>
    %136 = arith.addf %134, %135 : vector<8x512xf32>
    %137 = vector.extract_strided_slice %136 {offsets = [0, 0], sizes = [8, 384], strides = [1, 1]} : vector<8x512xf32> to vector<8x384xf32>
    %138 = arith.negf %137 : vector<8x384xf32>
    %139 = math.exp %138 : vector<8x384xf32>
    %cst_43 = arith.constant 1.000000e+00 : f32
    %140 = vector.broadcast %cst_43 : f32 to vector<8x384xf32>
    %141 = arith.addf %140, %139 : vector<8x384xf32>
    %142 = arith.divf %140, %141 : vector<8x384xf32>
    %143 = vector.extract_strided_slice %136 {offsets = [0, 384], sizes = [8, 128], strides = [1, 1]} : vector<8x512xf32> to vector<8x128xf32>
    %144 = math.tanh %143 : vector<8x128xf32>
    %145 = vector.extract_strided_slice %142 {offsets = [0, 0], sizes = [8, 128], strides = [1, 1]} : vector<8x384xf32> to vector<8x128xf32>
    %146 = vector.extract_strided_slice %142 {offsets = [0, 128], sizes = [8, 128], strides = [1, 1]} : vector<8x384xf32> to vector<8x128xf32>
    %147 = vector.extract_strided_slice %142 {offsets = [0, 256], sizes = [8, 128], strides = [1, 1]} : vector<8x384xf32> to vector<8x128xf32>
    %148 = arith.mulf %146, %130 : vector<8x128xf32>
    %149 = arith.mulf %145, %144 : vector<8x128xf32>
    %150 = arith.addf %148, %149 : vector<8x128xf32>
    %151 = math.tanh %150 : vector<8x128xf32>
    %152 = arith.mulf %147, %151 : vector<8x128xf32>
    %c40_44 = arith.constant 40 : index
    %c0_45 = arith.constant 0 : index
    %153 = vector.load %arg9[%c40_44, %c0_45] : memref<64x128xf32, #tpu.memory_space<vmem>>, vector<8x128xf32>
    tpu.vector_store %arg9[%c40_44, %c0_45], %152 {strides = array<i32>} : memref<64x128xf32, #tpu.memory_space<vmem>>, vector<8x128xf32>,
    %cst_46 = arith.constant dense<0.000000e+00> : vector<8x512xf32>
    %154 = tpu.matmul %152, %8, %cst_46 {dimension_numbers = #tpu.dot_dimension_numbers<[1], [0], [0], [1], [0, 0, 1, 1], [], []>} : vector<8x128xf32>, vector<128x512xf32>, vector<8x512xf32> -> vector<8x512xf32>
    %c56 = arith.constant 56 : index
    %c0_47 = arith.constant 0 : index
    %155 = vector.load %arg8[%c56, %c0_47] : memref<64x512xf32, #tpu.memory_space<vmem>>, vector<8x512xf32>
    %156 = arith.addf %154, %155 : vector<8x512xf32>
    %157 = vector.extract_strided_slice %156 {offsets = [0, 0], sizes = [8, 384], strides = [1, 1]} : vector<8x512xf32> to vector<8x384xf32>
    %158 = arith.negf %157 : vector<8x384xf32>
    %159 = math.exp %158 : vector<8x384xf32>
    %cst_48 = arith.constant 1.000000e+00 : f32
    %160 = vector.broadcast %cst_48 : f32 to vector<8x384xf32>
    %161 = arith.addf %160, %159 : vector<8x384xf32>
    %162 = arith.divf %160, %161 : vector<8x384xf32>
    %163 = vector.extract_strided_slice %156 {offsets = [0, 384], sizes = [8, 128], strides = [1, 1]} : vector<8x512xf32> to vector<8x128xf32>
    %164 = math.tanh %163 : vector<8x128xf32>
    %165 = vector.extract_strided_slice %162 {offsets = [0, 0], sizes = [8, 128], strides = [1, 1]} : vector<8x384xf32> to vector<8x128xf32>
    %166 = vector.extract_strided_slice %162 {offsets = [0, 128], sizes = [8, 128], strides = [1, 1]} : vector<8x384xf32> to vector<8x128xf32>
    %167 = vector.extract_strided_slice %162 {offsets = [0, 256], sizes = [8, 128], strides = [1, 1]} : vector<8x384xf32> to vector<8x128xf32>
    %168 = arith.mulf %166, %150 : vector<8x128xf32>
    %169 = arith.mulf %165, %164 : vector<8x128xf32>
    %170 = arith.addf %168, %169 : vector<8x128xf32>
    %171 = math.tanh %170 : vector<8x128xf32>
    %172 = arith.mulf %167, %171 : vector<8x128xf32>
    %c48_49 = arith.constant 48 : index
    %c0_50 = arith.constant 0 : index
    %173 = vector.load %arg9[%c48_49, %c0_50] : memref<64x128xf32, #tpu.memory_space<vmem>>, vector<8x128xf32>
    tpu.vector_store %arg9[%c48_49, %c0_50], %172 {strides = array<i32>} : memref<64x128xf32, #tpu.memory_space<vmem>>, vector<8x128xf32>,
    %cst_51 = arith.constant dense<0.000000e+00> : vector<8x512xf32>
    %174 = tpu.matmul %172, %8, %cst_51 {dimension_numbers = #tpu.dot_dimension_numbers<[1], [0], [0], [1], [0, 0, 1, 1], [], []>} : vector<8x128xf32>, vector<128x512xf32>, vector<8x512xf32> -> vector<8x512xf32>
    %175 = vector.broadcast %0 : vector<1x512xf32> to vector<8x512xf32>
    %176 = arith.addf %174, %175 : vector<8x512xf32>
    %177 = vector.extract_strided_slice %176 {offsets = [0, 0], sizes = [8, 384], strides = [1, 1]} : vector<8x512xf32> to vector<8x384xf32>
    %178 = arith.negf %177 : vector<8x384xf32>
    %179 = math.exp %178 : vector<8x384xf32>
    %cst_52 = arith.constant 1.000000e+00 : f32
    %180 = vector.broadcast %cst_52 : f32 to vector<8x384xf32>
    %181 = arith.addf %180, %179 : vector<8x384xf32>
    %182 = arith.divf %180, %181 : vector<8x384xf32>
    %183 = vector.extract_strided_slice %176 {offsets = [0, 384], sizes = [8, 128], strides = [1, 1]} : vector<8x512xf32> to vector<8x128xf32>
    %184 = math.tanh %183 : vector<8x128xf32>
    %185 = vector.extract_strided_slice %182 {offsets = [0, 0], sizes = [8, 128], strides = [1, 1]} : vector<8x384xf32> to vector<8x128xf32>
    %186 = vector.extract_strided_slice %182 {offsets = [0, 128], sizes = [8, 128], strides = [1, 1]} : vector<8x384xf32> to vector<8x128xf32>
    %187 = vector.extract_strided_slice %182 {offsets = [0, 256], sizes = [8, 128], strides = [1, 1]} : vector<8x384xf32> to vector<8x128xf32>
    %188 = arith.mulf %186, %170 : vector<8x128xf32>
    %189 = arith.mulf %185, %184 : vector<8x128xf32>
    %190 = arith.addf %188, %189 : vector<8x128xf32>
    %191 = math.tanh %190 : vector<8x128xf32>
    %192 = arith.mulf %187, %191 : vector<8x128xf32>
    %c56_53 = arith.constant 56 : index
    %c0_54 = arith.constant 0 : index
    %193 = vector.load %arg9[%c56_53, %c0_54] : memref<64x128xf32, #tpu.memory_space<vmem>>, vector<8x128xf32>
    tpu.vector_store %arg9[%c56_53, %c0_54], %192 {strides = array<i32>} : memref<64x128xf32, #tpu.memory_space<vmem>>, vector<8x128xf32>,
    %c0_55 = arith.constant 0 : index
    %c0_56 = arith.constant 0 : index
    %194 = vector.load %arg9[%c0_55, %c0_56] : memref<64x128xf32, #tpu.memory_space<vmem>>, vector<64x128xf32>
    %c0_57 = arith.constant 0 : index
    %c0_58 = arith.constant 0 : index
    %195 = vector.load %arg5[%c0_57, %c0_58] : memref<128x128xf32, #tpu.memory_space<vmem>>, vector<128x128xf32>
    %cst_59 = arith.constant dense<0.000000e+00> : vector<64x128xf32>
    %196 = tpu.matmul %194, %195, %cst_59 {dimension_numbers = #tpu.dot_dimension_numbers<[1], [0], [0], [1], [0, 0, 1, 1], [], []>} : vector<64x128xf32>, vector<128x128xf32>, vector<64x128xf32> -> vector<64x128xf32>
    %c0_60 = arith.constant 0 : index
    %c0_61 = arith.constant 0 : index
    %197 = vector.load %arg6[%c0_60, %c0_61] : memref<1x128xf32, #tpu.memory_space<vmem>>, vector<1x128xf32>
    %198 = vector.broadcast %197 : vector<1x128xf32> to vector<64x128xf32>
    %199 = arith.addf %196, %198 : vector<64x128xf32>
    %c0_62 = arith.constant 0 : index
    %c0_63 = arith.constant 0 : index
    %c0_64 = arith.constant 0 : index
    %200 = vector.load %arg7[%c0_62, %c0_63, %c0_64] : memref<1x64x128xf32, #tpu.memory_space<vmem>>, vector<1x64x128xf32>
    %201 = vector.shape_cast %200 : vector<1x64x128xf32> to vector<64x128xf32>
    %202 = vector.shape_cast %199 : vector<64x128xf32> to vector<1x64x128xf32>
    tpu.vector_store %arg7[%c0_62, %c0_63, %c0_64], %202 {strides = array<i32>} : memref<1x64x128xf32, #tpu.memory_space<vmem>>, vector<1x64x128xf32>,
    return
  }
  func.func @transform_0(%arg0: i32) -> (i32, i32, i32) {
    %c0_i32 = arith.constant 0 : i32
    %c0_i32_0 = arith.constant 0 : i32
    %c0_i32_1 = arith.constant 0 : i32
    return %arg0, %c0_i32, %c0_i32_0 : i32, i32, i32
  }
  func.func @transform_1(%arg0: i32) -> (i32, i32) {
    %c0_i32 = arith.constant 0 : i32
    %c0_i32_0 = arith.constant 0 : i32
    %c0_i32_1 = arith.constant 0 : i32
    return %c0_i32, %c0_i32_0 : i32, i32
  }
  func.func @transform_2(%arg0: i32) -> (i32, i32) {
    %c0_i32 = arith.constant 0 : i32
    %c0_i32_0 = arith.constant 0 : i32
    %c0_i32_1 = arith.constant 0 : i32
    return %c0_i32, %c0_i32_0 : i32, i32
  }
  func.func @transform_3(%arg0: i32) -> (i32, i32) {
    %c0_i32 = arith.constant 0 : i32
    %c0_i32_0 = arith.constant 0 : i32
    %c0_i32_1 = arith.constant 0 : i32
    return %c0_i32, %c0_i32_0 : i32, i32
  }
  func.func @transform_4(%arg0: i32) -> (i32, i32) {
    %c0_i32 = arith.constant 0 : i32
    %c0_i32_0 = arith.constant 0 : i32
    %c0_i32_1 = arith.constant 0 : i32
    return %c0_i32, %c0_i32_0 : i32, i32
  }
  func.func @transform_5(%arg0: i32) -> (i32, i32) {
    %c0_i32 = arith.constant 0 : i32
    %c0_i32_0 = arith.constant 0 : i32
    %c0_i32_1 = arith.constant 0 : i32
    return %c0_i32, %c0_i32_0 : i32, i32
  }
  func.func @transform_6(%arg0: i32) -> (i32, i32, i32) {
    %c0_i32 = arith.constant 0 : i32
    %c0_i32_0 = arith.constant 0 : i32
    %c0_i32_1 = arith.constant 0 : i32
    return %arg0, %c0_i32, %c0_i32_0 : i32, i32, i32
  }
}

</mosaic_0001>

<llo_original>
// kernel: lstm_forward.1
$region0: #{lstm_forward.1}
  #allocation0 [shape = 'u32[]', space=smem, size = 0x4, offset = 0x4, fixed_abs, tag = 'smem constant byte address 0x4 - core index']
  #allocation1 [shape = 'u32[144,128]{1,0:T(1,128)}', space=vmem, size = 0x12000, scoped, tag = 'internal scratch']
  #allocation2 [shape = 'f32[64,512]{1,0:T(8,128)}', space=vmem, size = 0x20000, scoped, tag = 'scratch operand']
  #allocation3 [shape = 'f32[64,128]{1,0:T(8,128)}', space=vmem, size = 0x8000, scoped, tag = 'scratch operand']
  %s0 = inlined_call_operand.vmem [shape: f32[1,64,3], index: 0, kind: input, shape index: {}]
  %s1 = inlined_call_operand.vmem [shape: f32[3,512], index: 1, kind: input, shape index: {}]
  %s2 = inlined_call_operand.vmem [shape: f32[128,512], index: 2, kind: input, shape index: {}]
  %s3 = inlined_call_operand.vmem [shape: f32[1,512], index: 3, kind: input, shape index: {}]
  %s4 = inlined_call_operand.vmem [shape: f32[128,128], index: 4, kind: input, shape index: {}]
  %s5 = inlined_call_operand.vmem [shape: f32[1,128], index: 5, kind: input, shape index: {}]
  %s6 = inlined_call_operand.vmem [shape: f32[1,64,128], index: 6, kind: output, shape index: {}]
  %s7 = sld [smem:[#allocation0]]
  $region34: #{lstm_forward.1} parent=0
    _
  %s9 = ssub.s32 1, %s7
  %s10 = scalar_select 0, %s9, %s7
  // Predicated region
  $region2: #{lstm_forward.1} parent=0 // pred_check
    _
  $region3: #{lstm_forward.1} parent=0 // pred_check_branch
    %12 = sbr.rel (0) target = $region5
  $region4: #{lstm_forward.1} parent=0 // pred_region
    _
  $region5: #{lstm_forward.1} parent=0 // pred_fallthru
    _
  // Predicated region
  $region6: #{lstm_forward.1} parent=0 // pred_check
    _
  $region7: #{lstm_forward.1} parent=0 // pred_check_branch
    %14 = sbr.rel (0) target = $region9
  $region8: #{lstm_forward.1} parent=0 // pred_region
    _
  $region9: #{lstm_forward.1} parent=0 // pred_fallthru
    _
  // Predicated region
  $region10: #{lstm_forward.1} parent=0 // pred_check
    _
  $region11: #{lstm_forward.1} parent=0 // pred_check_branch
    %16 = sbr.rel (0) target = $region13
  $region12: #{lstm_forward.1} parent=0 // pred_region
    _
  $region13: #{lstm_forward.1} parent=0 // pred_fallthru
    _
  // Predicated region
  $region14: #{lstm_forward.1} parent=0 // pred_check
    _
  $region15: #{lstm_forward.1} parent=0 // pred_check_branch
    %18 = sbr.rel (0) target = $region17
  $region16: #{lstm_forward.1} parent=0 // pred_region
    _
  $region17: #{lstm_forward.1} parent=0 // pred_fallthru
    _
  // Predicated region
  $region18: #{lstm_forward.1} parent=0 // pred_check
    _
  $region19: #{lstm_forward.1} parent=0 // pred_check_branch
    %20 = sbr.rel (0) target = $region21
  $region20: #{lstm_forward.1} parent=0 // pred_region
    _
  $region21: #{lstm_forward.1} parent=0 // pred_fallthru
    _
  // Predicated region
  $region22: #{lstm_forward.1} parent=0 // pred_check
    _
  $region23: #{lstm_forward.1} parent=0 // pred_check_branch
    %22 = sbr.rel (0) target = $region25
  $region24: #{lstm_forward.1} parent=0 // pred_region
    _
  $region25: #{lstm_forward.1} parent=0 // pred_fallthru
    _
  %v23 = vld [vmem:[%s3] sm:$0xf]
  %v24 = vld [vmem:[%s0] sm:$0xff]
  %v25 = vld [vmem:[%s0 + $0x8] sm:$0xff]
  %v26 = vld [vmem:[%s0 + $0x10] sm:$0xff]
  %v27 = vld [vmem:[%s0 + $0x18] sm:$0xff]
  %v28 = vld [vmem:[%s0 + $0x20] sm:$0xff]
  %v29 = vld [vmem:[%s0 + $0x28] sm:$0xff]
  %v30 = vld [vmem:[%s0 + $0x30] sm:$0xff]
  %v31 = vld [vmem:[%s0 + $0x38] sm:$0xff]
  %v32 = vld [vmem:[%s1] sm:$0x77]
  %v33 = vld [vmem:[%s1 + $0x8] sm:$0x77]
  %v35 = vlaneseq
  %v36 = vshrl.u32 %v35, 7
  %v37 = vsub.s32 0, %v36
  %v38 = vrot.slane %v23, %v37
  %v39 = vlaneseq
  %v40 = vshrl.u32 %v39, 7
  %v41 = vsub.s32 1, %v40
  %v42 = vrot.slane %v23, %v41
  %v43 = vlaneseq
  %v44 = vshrl.u32 %v43, 7
  %v45 = vsub.s32 2, %v44
  %v46 = vrot.slane %v23, %v45
  %v47 = vlaneseq
  %v48 = vshrl.u32 %v47, 7
  %v49 = vsub.s32 3, %v48
  %v50 = vrot.slane %v23, %v49
  %v57 = vcombine.high %v32, %v32
  %v58 = vcombine.high %v33, %v33
  %vm59 = vcmask 23552
  %v61 = vsel %vm59, %v24, 0
  %v64 = vsel %vm59, %v25, 0
  %v67 = vsel %vm59, %v26, 0
  %v70 = vsel %vm59, %v27, 0
  %v73 = vsel %vm59, %v28, 0
  %v76 = vsel %vm59, %v29, 0
  %v79 = vsel %vm59, %v30, 0
  %v82 = vsel %vm59, %v31, 0
  %vm84 = vcmask 1042432
  %v85 = vsel %vm84, %v32, 0
  %v87 = vsel %vm84, %v57, 0
  %v89 = vsel %vm84, %v33, 0
  %v91 = vsel %vm84, %v58, 0
  %93 = vmatprep.subr.mxu0 %v87
  %94 = vmatpush1.msra.mxu0 %v85
  %95 = vmatprep.subr.mxu0 0.0
  %96 = vmatpush1.msra.mxu0 0.0
  %97 = vmatprep.subr.mxu0 0.0
  %98 = vmatpush1.msra.mxu0 0.0
  %99 = vmatprep.subr.mxu0 0.0
  %100 = vmatpush1.msra.mxu0 0.0
  %101 = vmatprep.subr.mxu0 0.0
  %102 = vmatpush1.msra.mxu0 0.0
  %103 = vmatprep.subr.mxu0 0.0
  %104 = vmatpush1.msra.mxu0 0.0
  %105 = vmatprep.subr.mxu0 0.0
  %106 = vmatpush1.msra.mxu0 0.0
  %107 = vmatprep.subr.mxu0 0.0
  %108 = vmatpush1.msra.mxu0 0.0
  %109 = vmatprep.subr.mxu0 0.0
  %110 = vmatpush1.msra.mxu0 0.0
  %111 = vmatprep.subr.mxu0 0.0
  %112 = vmatpush1.msra.mxu0 0.0
  %113 = vmatprep.subr.mxu0 0.0
  %114 = vmatpush1.msra.mxu0 0.0
  %115 = vmatprep.subr.mxu0 0.0
  %116 = vmatpush1.msra.mxu0 0.0
  %117 = vmatprep.subr.mxu0 0.0
  %118 = vmatpush1.msra.mxu0 0.0
  %119 = vmatprep.subr.mxu0 0.0
  %120 = vmatpush1.msra.mxu0 0.0
  %121 = vmatprep.subr.mxu0 0.0
  %122 = vmatpush1.msra.mxu0 0.0
  %123 = vmatprep.subr.mxu0 0.0
  %124 = vmatpush1.msra.mxu0 0.0
  %125 = vmatprep.subr.mxu0 0.0
  %126 = vmatpush1.msra.mxu0 0.0
  %127 = vmatprep.subr.mxu0 0.0
  %128 = vmatpush1.msra.mxu0 0.0
  %129 = vmatprep.subr.mxu0 0.0
  %130 = vmatpush1.msra.mxu0 0.0
  %131 = vmatprep.subr.mxu0 0.0
  %132 = vmatpush1.msra.mxu0 0.0
  %133 = vmatprep.subr.mxu0 0.0
  %134 = vmatpush1.msra.mxu0 0.0
  %135 = vmatprep.subr.mxu0 0.0
  %136 = vmatpush1.msra.mxu0 0.0
  %137 = vmatprep.subr.mxu0 0.0
  %138 = vmatpush1.msra.mxu0 0.0
  %139 = vmatprep.subr.mxu0 0.0
  %140 = vmatpush1.msra.mxu0 0.0
  %141 = vmatprep.subr.mxu0 0.0
  %142 = vmatpush1.msra.mxu0 0.0
  %143 = vmatprep.subr.mxu0 0.0
  %144 = vmatpush1.msra.mxu0 0.0
  %145 = vmatprep.subr.mxu0 0.0
  %146 = vmatpush1.msra.mxu0 0.0
  %147 = vmatprep.subr.mxu0 0.0
  %148 = vmatpush1.msra.mxu0 0.0
  %149 = vmatprep.subr.mxu0 0.0
  %150 = vmatpush1.msra.mxu0 0.0
  %151 = vmatprep.subr.mxu0 0.0
  %152 = vmatpush1.msra.mxu0 0.0
  %153 = vmatprep.subr.mxu0 0.0
  %154 = vmatpush1.msra.mxu0 0.0
  %155 = vmatprep.subr.mxu0 0.0
  %156 = vmatpush1.msra.mxu0 0.0
  %157 = vmatprep.mubr.f32.mxu0 0.0
  %158 = vmatmul.mubr.f32.gmra.mrb[0].mxu0 %v61
  %v159 = vpop.f32.mrb[0].mxu0
  %v160 = vadd.f32 %v38, %v159
  %v161 = vpop.f32.mrb[0].mxu0
  %v162 = vadd.f32 %v42, %v161
  %163 = vmatprep.mubr.f32.mxu0 0.0
  %164 = vmatmul.mubr.f32.gmra.mrb[0].mxu0 %v64
  %v165 = vpop.f32.mrb[0].mxu0
  %v166 = vadd.f32 %v38, %v165
  %v167 = vpop.f32.mrb[0].mxu0
  %v168 = vadd.f32 %v42, %v167
  %169 = vmatprep.mubr.f32.mxu0 0.0
  %170 = vmatmul.mubr.f32.gmra.mrb[0].mxu0 %v67
  %v171 = vpop.f32.mrb[0].mxu0
  %v172 = vadd.f32 %v38, %v171
  %v173 = vpop.f32.mrb[0].mxu0
  %v174 = vadd.f32 %v42, %v173
  %175 = vmatprep.mubr.f32.mxu0 0.0
  %176 = vmatmul.mubr.f32.gmra.mrb[0].mxu0 %v70
  %v177 = vpop.f32.mrb[0].mxu0
  %v178 = vadd.f32 %v38, %v177
  %v179 = vpop.f32.mrb[0].mxu0
  %v180 = vadd.f32 %v42, %v179
  %181 = vmatprep.mubr.f32.mxu0 0.0
  %182 = vmatmul.mubr.f32.gmra.mrb[0].mxu0 %v73
  %v183 = vpop.f32.mrb[0].mxu0
  %v184 = vadd.f32 %v38, %v183
  %v185 = vpop.f32.mrb[0].mxu0
  %v186 = vadd.f32 %v42, %v185
  %187 = vmatprep.mubr.f32.mxu0 0.0
  %188 = vmatmul.mubr.f32.gmra.mrb[0].mxu0 %v76
  %v189 = vpop.f32.mrb[0].mxu0
  %v190 = vadd.f32 %v38, %v189
  %v191 = vpop.f32.mrb[0].mxu0
  %v192 = vadd.f32 %v42, %v191
  %193 = vmatprep.mubr.f32.mxu0 0.0
  %194 = vmatmul.mubr.f32.gmra.mrb[0].mxu0 %v79
  %v195 = vpop.f32.mrb[0].mxu0
  %v196 = vadd.f32 %v38, %v195
  %v197 = vpop.f32.mrb[0].mxu0
  %v198 = vadd.f32 %v42, %v197
  %199 = vmatprep.mubr.f32.mxu0 0.0
  %200 = vmatmul.mubr.f32.gmra.mrb[0].mxu0 %v82
  %v201 = vpop.f32.mrb[0].mxu0
  %v202 = vadd.f32 %v38, %v201
  %v203 = vpop.f32.mrb[0].mxu0
  %v204 = vadd.f32 %v42, %v203
  %205 = vdwg.mxu0
  %206 = vmatprep.subr.mxu0 %v91
  %207 = vmatpush1.msra.mxu0 %v89
  %208 = vmatprep.subr.mxu0 0.0
  %209 = vmatpush1.msra.mxu0 0.0
  %210 = vmatprep.subr.mxu0 0.0
  %211 = vmatpush1.msra.mxu0 0.0
  %212 = vmatprep.subr.mxu0 0.0
  %213 = vmatpush1.msra.mxu0 0.0
  %214 = vmatprep.subr.mxu0 0.0
  %215 = vmatpush1.msra.mxu0 0.0
  %216 = vmatprep.subr.mxu0 0.0
  %217 = vmatpush1.msra.mxu0 0.0
  %218 = vmatprep.subr.mxu0 0.0
  %219 = vmatpush1.msra.mxu0 0.0
  %220 = vmatprep.subr.mxu0 0.0
  %221 = vmatpush1.msra.mxu0 0.0
  %222 = vmatprep.subr.mxu0 0.0
  %223 = vmatpush1.msra.mxu0 0.0
  %224 = vmatprep.subr.mxu0 0.0
  %225 = vmatpush1.msra.mxu0 0.0
  %226 = vmatprep.subr.mxu0 0.0
  %227 = vmatpush1.msra.mxu0 0.0
  %228 = vmatprep.subr.mxu0 0.0
  %229 = vmatpush1.msra.mxu0 0.0
  %230 = vmatprep.subr.mxu0 0.0
  %231 = vmatpush1.msra.mxu0 0.0
  %232 = vmatprep.subr.mxu0 0.0
  %233 = vmatpush1.msra.mxu0 0.0
  %234 = vmatprep.subr.mxu0 0.0
  %235 = vmatpush1.msra.mxu0 0.0
  %236 = vmatprep.subr.mxu0 0.0
  %237 = vmatpush1.msra.mxu0 0.0
  %238 = vmatprep.subr.mxu0 0.0
  %239 = vmatpush1.msra.mxu0 0.0
  %240 = vmatprep.subr.mxu0 0.0
  %241 = vmatpush1.msra.mxu0 0.0
  %242 = vmatprep.subr.mxu0 0.0
  %243 = vmatpush1.msra.mxu0 0.0
  %244 = vmatprep.subr.mxu0 0.0
  %245 = vmatpush1.msra.mxu0 0.0
  %246 = vmatprep.subr.mxu0 0.0
  %247 = vmatpush1.msra.mxu0 0.0
  %248 = vmatprep.subr.mxu0 0.0
  %249 = vmatpush1.msra.mxu0 0.0
  %250 = vmatprep.subr.mxu0 0.0
  %251 = vmatpush1.msra.mxu0 0.0
  %252 = vmatprep.subr.mxu0 0.0
  %253 = vmatpush1.msra.mxu0 0.0
  %254 = vmatprep.subr.mxu0 0.0
  %255 = vmatpush1.msra.mxu0 0.0
  %256 = vmatprep.subr.mxu0 0.0
  %257 = vmatpush1.msra.mxu0 0.0
  %258 = vmatprep.subr.mxu0 0.0
  %259 = vmatpush1.msra.mxu0 0.0
  %260 = vmatprep.subr.mxu0 0.0
  %261 = vmatpush1.msra.mxu0 0.0
  %262 = vmatprep.subr.mxu0 0.0
  %263 = vmatpush1.msra.mxu0 0.0
  %264 = vmatprep.subr.mxu0 0.0
  %265 = vmatpush1.msra.mxu0 0.0
  %266 = vmatprep.subr.mxu0 0.0
  %267 = vmatpush1.msra.mxu0 0.0
  %268 = vmatprep.subr.mxu0 0.0
  %269 = vmatpush1.msra.mxu0 0.0
  %270 = vmatprep.mubr.f32.mxu0 0.0
  %271 = vmatmul.mubr.f32.gmra.mrb[0].mxu0 %v61
  %v272 = vpop.f32.mrb[0].mxu0
  %v273 = vadd.f32 %v46, %v272
  %v274 = vpop.f32.mrb[0].mxu0
  %v275 = vadd.f32 %v50, %v274
  %276 = vmatprep.mubr.f32.mxu0 0.0
  %277 = vmatmul.mubr.f32.gmra.mrb[0].mxu0 %v64
  %v278 = vpop.f32.mrb[0].mxu0
  %v279 = vadd.f32 %v46, %v278
  %v280 = vpop.f32.mrb[0].mxu0
  %v281 = vadd.f32 %v50, %v280
  %282 = vmatprep.mubr.f32.mxu0 0.0
  %283 = vmatmul.mubr.f32.gmra.mrb[0].mxu0 %v67
  %v284 = vpop.f32.mrb[0].mxu0
  %v285 = vadd.f32 %v46, %v284
  %v286 = vpop.f32.mrb[0].mxu0
  %v287 = vadd.f32 %v50, %v286
  %288 = vmatprep.mubr.f32.mxu0 0.0
  %289 = vmatmul.mubr.f32.gmra.mrb[0].mxu0 %v70
  %v290 = vpop.f32.mrb[0].mxu0
  %v291 = vadd.f32 %v46, %v290
  %v292 = vpop.f32.mrb[0].mxu0
  %v293 = vadd.f32 %v50, %v292
  %294 = vmatprep.mubr.f32.mxu0 0.0
  %295 = vmatmul.mubr.f32.gmra.mrb[0].mxu0 %v73
  %v296 = vpop.f32.mrb[0].mxu0
  %v297 = vadd.f32 %v46, %v296
  %v298 = vpop.f32.mrb[0].mxu0
  %v299 = vadd.f32 %v50, %v298
  %300 = vmatprep.mubr.f32.mxu0 0.0
  %301 = vmatmul.mubr.f32.gmra.mrb[0].mxu0 %v76
  %v302 = vpop.f32.mrb[0].mxu0
  %v303 = vadd.f32 %v46, %v302
  %v304 = vpop.f32.mrb[0].mxu0
  %v305 = vadd.f32 %v50, %v304
  %306 = vmatprep.mubr.f32.mxu0 0.0
  %307 = vmatmul.mubr.f32.gmra.mrb[0].mxu0 %v79
  %v308 = vpop.f32.mrb[0].mxu0
  %v309 = vadd.f32 %v46, %v308
  %v310 = vpop.f32.mrb[0].mxu0
  %v311 = vadd.f32 %v50, %v310
  %312 = vmatprep.mubr.f32.mxu0 0.0
  %313 = vmatmul.mubr.f32.gmra.mrb[0].mxu0 %v82
  %v314 = vpop.f32.mrb[0].mxu0
  %v315 = vadd.f32 %v46, %v314
  %v316 = vpop.f32.mrb[0].mxu0
  %v317 = vadd.f32 %v50, %v316
  %318 = vdwg.mxu0
  %319 = vst [vmem:[#allocation2] sm:$0xff] %v160
  %320 = vst [vmem:[#allocation2 + $0x8] sm:$0xff] %v162
  %321 = vst [vmem:[#allocation2 + $0x10] sm:$0xff] %v273
  %322 = vst [vmem:[#allocation2 + $0x18] sm:$0xff] %v275
  %323 = vst [vmem:[#allocation2 + $0x20] sm:$0xff] %v166
  %324 = vst [vmem:[#allocation2 + $0x28] sm:$0xff] %v168
  %325 = vst [vmem:[#allocation2 + $0x30] sm:$0xff] %v279
  %326 = vst [vmem:[#allocation2 + $0x38] sm:$0xff] %v281
  %327 = vst [vmem:[#allocation2 + $0x40] sm:$0xff] %v172
  %328 = vst [vmem:[#allocation2 + $0x48] sm:$0xff] %v174
  %329 = vst [vmem:[#allocation2 + $0x50] sm:$0xff] %v285
  %330 = vst [vmem:[#allocation2 + $0x58] sm:$0xff] %v287
  %331 = vst [vmem:[#allocation2 + $0x60] sm:$0xff] %v178
  %332 = vst [vmem:[#allocation2 + $0x68] sm:$0xff] %v180
  %333 = vst [vmem:[#allocation2 + $0x70] sm:$0xff] %v291
  %334 = vst [vmem:[#allocation2 + $0x78] sm:$0xff] %v293
  %335 = vst [vmem:[#allocation2 + $0x80] sm:$0xff] %v184
  %336 = vst [vmem:[#allocation2 + $0x88] sm:$0xff] %v186
  %337 = vst [vmem:[#allocation2 + $0x90] sm:$0xff] %v297
  %338 = vst [vmem:[#allocation2 + $0x98] sm:$0xff] %v299
  %339 = vst [vmem:[#allocation2 + $0xa0] sm:$0xff] %v190
  %340 = vst [vmem:[#allocation2 + $0xa8] sm:$0xff] %v192
  %341 = vst [vmem:[#allocation2 + $0xb0] sm:$0xff] %v303
  %342 = vst [vmem:[#allocation2 + $0xb8] sm:$0xff] %v305
  %343 = vst [vmem:[#allocation2 + $0xc0] sm:$0xff] %v196
  %344 = vst [vmem:[#allocation2 + $0xc8] sm:$0xff] %v198
  %345 = vst [vmem:[#allocation2 + $0xd0] sm:$0xff] %v309
  %346 = vst [vmem:[#allocation2 + $0xd8] sm:$0xff] %v311
  %347 = vst [vmem:[#allocation2 + $0xe0] sm:$0xff] %v202
  %348 = vst [vmem:[#allocation2 + $0xe8] sm:$0xff] %v204
  %349 = vst [vmem:[#allocation2 + $0xf0] sm:$0xff] %v315
  %350 = vst [vmem:[#allocation2 + $0xf8] sm:$0xff] %v317
  %v351 = vld [vmem:[%s2] sm:$0xff]
  %v352 = vld [vmem:[%s2 + $0x8] sm:$0xff]
  %v353 = vld [vmem:[%s2 + $0x10] sm:$0xff]
  %v354 = vld [vmem:[%s2 + $0x18] sm:$0xff]
  %v355 = vld [vmem:[%s2 + $0x20] sm:$0xff]
  %v356 = vld [vmem:[%s2 + $0x28] sm:$0xff]
  %v357 = vld [vmem:[%s2 + $0x30] sm:$0xff]
  %v358 = vld [vmem:[%s2 + $0x38] sm:$0xff]
  %v359 = vld [vmem:[%s2 + $0x40] sm:$0xff]
  %v360 = vld [vmem:[%s2 + $0x48] sm:$0xff]
  %v361 = vld [vmem:[%s2 + $0x50] sm:$0xff]
  %v362 = vld [vmem:[%s2 + $0x58] sm:$0xff]
  %v363 = vld [vmem:[%s2 + $0x60] sm:$0xff]
  %v364 = vld [vmem:[%s2 + $0x68] sm:$0xff]
  %v365 = vld [vmem:[%s2 + $0x70] sm:$0xff]
  %v366 = vld [vmem:[%s2 + $0x78] sm:$0xff]
  %v367 = vld [vmem:[%s2 + $0x80] sm:$0xff]
  %v368 = vld [vmem:[%s2 + $0x88] sm:$0xff]
  %v369 = vld [vmem:[%s2 + $0x90] sm:$0xff]
  %v370 = vld [vmem:[%s2 + $0x98] sm:$0xff]
  %v371 = vld [vmem:[%s2 + $0xa0] sm:$0xff]
  %v372 = vld [vmem:[%s2 + $0xa8] sm:$0xff]
  %v373 = vld [vmem:[%s2 + $0xb0] sm:$0xff]
  %v374 = vld [vmem:[%s2 + $0xb8] sm:$0xff]
  %v375 = vld [vmem:[%s2 + $0xc0] sm:$0xff]
  %v376 = vld [vmem:[%s2 + $0xc8] sm:$0xff]
  %v377 = vld [vmem:[%s2 + $0xd0] sm:$0xff]
  %v378 = vld [vmem:[%s2 + $0xd8] sm:$0xff]
  %v379 = vld [vmem:[%s2 + $0xe0] sm:$0xff]
  %v380 = vld [vmem:[%s2 + $0xe8] sm:$0xff]
  %v381 = vld [vmem:[%s2 + $0xf0] sm:$0xff]
  %v382 = vld [vmem:[%s2 + $0xf8] sm:$0xff]
  %v383 = vld [vmem:[%s2 + $0x100] sm:$0xff]
  %v384 = vld [vmem:[%s2 + $0x108] sm:$0xff]
  %v385 = vld [vmem:[%s2 + $0x110] sm:$0xff]
  %v386 = vld [vmem:[%s2 + $0x118] sm:$0xff]
  %v387 = vld [vmem:[%s2 + $0x120] sm:$0xff]
  %v388 = vld [vmem:[%s2 + $0x128] sm:$0xff]
  %v389 = vld [vmem:[%s2 + $0x130] sm:$0xff]
  %v390 = vld [vmem:[%s2 + $0x138] sm:$0xff]
  %v391 = vld [vmem:[%s2 + $0x140] sm:$0xff]
  %v392 = vld [vmem:[%s2 + $0x148] sm:$0xff]
  %v393 = vld [vmem:[%s2 + $0x150] sm:$0xff]
  %v394 = vld [vmem:[%s2 + $0x158] sm:$0xff]
  %v395 = vld [vmem:[%s2 + $0x160] sm:$0xff]
  %v396 = vld [vmem:[%s2 + $0x168] sm:$0xff]
  %v397 = vld [vmem:[%s2 + $0x170] sm:$0xff]
  %v398 = vld [vmem:[%s2 + $0x178] sm:$0xff]
  %v399 = vld [vmem:[%s2 + $0x180] sm:$0xff]
  %v400 = vld [vmem:[%s2 + $0x188] sm:$0xff]
  %v401 = vld [vmem:[%s2 + $0x190] sm:$0xff]
  %v402 = vld [vmem:[%s2 + $0x198] sm:$0xff]
  %v403 = vld [vmem:[%s2 + $0x1a0] sm:$0xff]
  %v404 = vld [vmem:[%s2 + $0x1a8] sm:$0xff]
  %v405 = vld [vmem:[%s2 + $0x1b0] sm:$0xff]
  %v406 = vld [vmem:[%s2 + $0x1b8] sm:$0xff]
  %v407 = vld [vmem:[%s2 + $0x1c0] sm:$0xff]
  %v408 = vld [vmem:[%s2 + $0x1c8] sm:$0xff]
  %v409 = vld [vmem:[%s2 + $0x1d0] sm:$0xff]
  %v410 = vld [vmem:[%s2 + $0x1d8] sm:$0xff]
  %v411 = vld [vmem:[%s2 + $0x1e0] sm:$0xff]
  %v412 = vld [vmem:[%s2 + $0x1e8] sm:$0xff]
  %v413 = vld [vmem:[%s2 + $0x1f0] sm:$0xff]
  %v414 = vld [vmem:[%s2 + $0x1f8] sm:$0xff]
  %v415 = vlaneseq
  %v416 = vand.u32 %v415, 127
  %vm417 = vcmp.lt.s32.totalorder %v416, 64
  %v418 = vld [vmem:[#allocation2] sm:$0xff]
  %v419 = vld [vmem:[#allocation2 + $0x8] sm:$0xff]
  %v420 = vld [vmem:[#allocation2 + $0x10] sm:$0xff]
  %v421 = vld [vmem:[#allocation2 + $0x18] sm:$0xff]
  %v422 = vxor.u32 %v418, 2147483648
  %v423 = vxor.u32 %v419, 2147483648
  %v424 = vxor.u32 %v420, 2147483648
  %v425 = vmul.f32 %v422, 1.442695
  %v426 = vpow.pop %v425
  %v427 = vmul.f32 %v423, 1.442695
  %v428 = vpow.pop %v427
  %v429 = vmul.f32 %v424, 1.442695
  %v430 = vpow.pop %v429
  %v431 = vadd.f32 %v426, 1.0
  %v432 = vadd.f32 %v428, 1.0
  %v433 = vadd.f32 %v430, 1.0
  %v434 = vrcp.pop %v431
  %v435 = vmul.f32 1.0, %v434
  %v436 = vrcp.pop %v432
  %v437 = vmul.f32 1.0, %v436
  %v438 = vrcp.pop %v433
  %v439 = vmul.f32 1.0, %v438
  %v440 = vtanh.pop %v421
  %v441 = vmul.f32 %v437, 0.0
  %v442 = vmul.f32 %v435, %v440
  %v443 = vadd.f32 %v441, %v442
  %v444 = vtanh.pop %v443
  %v445 = vmul.f32 %v439, %v444
  %v446 = vsel %vm417, %v445, 0.0
  %v447 = vsel %vm417, %v443, 0.0
  %v448 = vld [vmem:[#allocation2 + $0x20] sm:$0xff]
  %v449 = vld [vmem:[#allocation2 + $0x28] sm:$0xff]
  %v450 = vld [vmem:[#allocation2 + $0x30] sm:$0xff]
  %v451 = vld [vmem:[#allocation2 + $0x38] sm:$0xff]
  %452 = vmatprep.subr.mxu0 %v352
  %453 = vmatpush1.msra.mxu0 %v351
  %454 = vmatprep.subr.mxu0 %v356
  %455 = vmatpush1.msra.mxu0 %v355
  %456 = vmatprep.subr.mxu0 %v360
  %457 = vmatpush1.msra.mxu0 %v359
  %458 = vmatprep.subr.mxu0 %v364
  %459 = vmatpush1.msra.mxu0 %v363
  %460 = vmatprep.subr.mxu0 %v368
  %461 = vmatpush1.msra.mxu0 %v367
  %462 = vmatprep.subr.mxu0 %v372
  %463 = vmatpush1.msra.mxu0 %v371
  %464 = vmatprep.subr.mxu0 %v376
  %465 = vmatpush1.msra.mxu0 %v375
  %466 = vmatprep.subr.mxu0 %v380
  %467 = vmatpush1.msra.mxu0 %v379
  %468 = vmatprep.subr.mxu0 %v384
  %469 = vmatpush1.msra.mxu0 %v383
  %470 = vmatprep.subr.mxu0 %v388
  %471 = vmatpush1.msra.mxu0 %v387
  %472 = vmatprep.subr.mxu0 %v392
  %473 = vmatpush1.msra.mxu0 %v391
  %474 = vmatprep.subr.mxu0 %v396
  %475 = vmatpush1.msra.mxu0 %v395
  %476 = vmatprep.subr.mxu0 %v400
  %477 = vmatpush1.msra.mxu0 %v399
  %478 = vmatprep.subr.mxu0 %v404
  %479 = vmatpush1.msra.mxu0 %v403
  %480 = vmatprep.subr.mxu0 %v408
  %481 = vmatpush1.msra.mxu0 %v407
  %482 = vmatprep.subr.mxu0 %v412
  %483 = vmatpush1.msra.mxu0 %v411
  %484 = vmatprep.subr.mxu0 0.0
  %485 = vmatpush1.msra.mxu0 0.0
  %486 = vmatprep.subr.mxu0 0.0
  %487 = vmatpush1.msra.mxu0 0.0
  %488 = vmatprep.subr.mxu0 0.0
  %489 = vmatpush1.msra.mxu0 0.0
  %490 = vmatprep.subr.mxu0 0.0
  %491 = vmatpush1.msra.mxu0 0.0
  %492 = vmatprep.subr.mxu0 0.0
  %493 = vmatpush1.msra.mxu0 0.0
  %494 = vmatprep.subr.mxu0 0.0
  %495 = vmatpush1.msra.mxu0 0.0
  %496 = vmatprep.subr.mxu0 0.0
  %497 = vmatpush1.msra.mxu0 0.0
  %498 = vmatprep.subr.mxu0 0.0
  %499 = vmatpush1.msra.mxu0 0.0
  %500 = vmatprep.subr.mxu0 0.0
  %501 = vmatpush1.msra.mxu0 0.0
  %502 = vmatprep.subr.mxu0 0.0
  %503 = vmatpush1.msra.mxu0 0.0
  %504 = vmatprep.subr.mxu0 0.0
  %505 = vmatpush1.msra.mxu0 0.0
  %506 = vmatprep.subr.mxu0 0.0
  %507 = vmatpush1.msra.mxu0 0.0
  %508 = vmatprep.subr.mxu0 0.0
  %509 = vmatpush1.msra.mxu0 0.0
  %510 = vmatprep.subr.mxu0 0.0
  %511 = vmatpush1.msra.mxu0 0.0
  %512 = vmatprep.subr.mxu0 0.0
  %513 = vmatpush1.msra.mxu0 0.0
  %514 = vmatprep.subr.mxu0 0.0
  %515 = vmatpush1.msra.mxu0 0.0
  %516 = vmatprep.mubr.f32.mxu0 0.0
  %517 = vmatmul.mubr.f32.gmra.mrb[0].mxu0 %v446
  %v518 = vpop.f32.mrb[0].mxu0
  %v519 = vadd.f32 %v448, %v518
  %v520 = vpop.f32.mrb[0].mxu0
  %v521 = vadd.f32 %v449, %v520
  %522 = vdwg.mxu0
  %523 = vmatprep.subr.mxu0 %v354
  %524 = vmatpush1.msra.mxu0 %v353
  %525 = vmatprep.subr.mxu0 %v358
  %526 = vmatpush1.msra.mxu0 %v357
  %527 = vmatprep.subr.mxu0 %v362
  %528 = vmatpush1.msra.mxu0 %v361
  %529 = vmatprep.subr.mxu0 %v366
  %530 = vmatpush1.msra.mxu0 %v365
  %531 = vmatprep.subr.mxu0 %v370
  %532 = vmatpush1.msra.mxu0 %v369
  %533 = vmatprep.subr.mxu0 %v374
  %534 = vmatpush1.msra.mxu0 %v373
  %535 = vmatprep.subr.mxu0 %v378
  %536 = vmatpush1.msra.mxu0 %v377
  %537 = vmatprep.subr.mxu0 %v382
  %538 = vmatpush1.msra.mxu0 %v381
  %539 = vmatprep.subr.mxu0 %v386
  %540 = vmatpush1.msra.mxu0 %v385
  %541 = vmatprep.subr.mxu0 %v390
  %542 = vmatpush1.msra.mxu0 %v389
  %543 = vmatprep.subr.mxu0 %v394
  %544 = vmatpush1.msra.mxu0 %v393
  %545 = vmatprep.subr.mxu0 %v398
  %546 = vmatpush1.msra.mxu0 %v397
  %547 = vmatprep.subr.mxu0 %v402
  %548 = vmatpush1.msra.mxu0 %v401
  %549 = vmatprep.subr.mxu0 %v406
  %550 = vmatpush1.msra.mxu0 %v405
  %551 = vmatprep.subr.mxu0 %v410
  %552 = vmatpush1.msra.mxu0 %v409
  %553 = vmatprep.subr.mxu0 %v414
  %554 = vmatpush1.msra.mxu0 %v413
  %555 = vmatprep.subr.mxu0 0.0
  %556 = vmatpush1.msra.mxu0 0.0
  %557 = vmatprep.subr.mxu0 0.0
  %558 = vmatpush1.msra.mxu0 0.0
  %559 = vmatprep.subr.mxu0 0.0
  %560 = vmatpush1.msra.mxu0 0.0
  %561 = vmatprep.subr.mxu0 0.0
  %562 = vmatpush1.msra.mxu0 0.0
  %563 = vmatprep.subr.mxu0 0.0
  %564 = vmatpush1.msra.mxu0 0.0
  %565 = vmatprep.subr.mxu0 0.0
  %566 = vmatpush1.msra.mxu0 0.0
  %567 = vmatprep.subr.mxu0 0.0
  %568 = vmatpush1.msra.mxu0 0.0
  %569 = vmatprep.subr.mxu0 0.0
  %570 = vmatpush1.msra.mxu0 0.0
  %571 = vmatprep.subr.mxu0 0.0
  %572 = vmatpush1.msra.mxu0 0.0
  %573 = vmatprep.subr.mxu0 0.0
  %574 = vmatpush1.msra.mxu0 0.0
  %575 = vmatprep.subr.mxu0 0.0
  %576 = vmatpush1.msra.mxu0 0.0
  %577 = vmatprep.subr.mxu0 0.0
  %578 = vmatpush1.msra.mxu0 0.0
  %579 = vmatprep.subr.mxu0 0.0
  %580 = vmatpush1.msra.mxu0 0.0
  %581 = vmatprep.subr.mxu0 0.0
  %582 = vmatpush1.msra.mxu0 0.0
  %583 = vmatprep.subr.mxu0 0.0
  %584 = vmatpush1.msra.mxu0 0.0
  %585 = vmatprep.subr.mxu0 0.0
  %586 = vmatpush1.msra.mxu0 0.0
  %587 = vmatprep.mubr.f32.mxu0 0.0
  %588 = vmatmul.mubr.f32.gmra.mrb[0].mxu0 %v446
  %v589 = vpop.f32.mrb[0].mxu0
  %v590 = vadd.f32 %v450, %v589
  %v591 = vpop.f32.mrb[0].mxu0
  %v592 = vadd.f32 %v451, %v591
  %593 = vdwg.mxu0
  %v594 = vxor.u32 %v519, 2147483648
  %v595 = vxor.u32 %v521, 2147483648
  %v596 = vxor.u32 %v590, 2147483648
  %v597 = vmul.f32 %v594, 1.442695
  %v598 = vpow.pop %v597
  %v599 = vmul.f32 %v595, 1.442695
  %v600 = vpow.pop %v599
  %v601 = vmul.f32 %v596, 1.442695
  %v602 = vpow.pop %v601
  %v603 = vadd.f32 %v598, 1.0
  %v604 = vadd.f32 %v600, 1.0
  %v605 = vadd.f32 %v602, 1.0
  %v606 = vrcp.pop %v603
  %v607 = vmul.f32 1.0, %v606
  %v608 = vrcp.pop %v604
  %v609 = vmul.f32 1.0, %v608
  %v610 = vrcp.pop %v605
  %v611 = vmul.f32 1.0, %v610
  %v612 = vtanh.pop %v592
  %v613 = vmul.f32 %v609, %v447
  %v614 = vmul.f32 %v607, %v612
  %v615 = vadd.f32 %v613, %v614
  %v616 = vtanh.pop %v615
  %v617 = vmul.f32 %v611, %v616
  %618 = vst [vmem:[#allocation3] sm:$0xff] %v617
  %v619 = vld [vmem:[#allocation2 + $0x40] sm:$0xff]
  %v620 = vld [vmem:[#allocation2 + $0x48] sm:$0xff]
  %v621 = vld [vmem:[#allocation2 + $0x50] sm:$0xff]
  %v622 = vld [vmem:[#allocation2 + $0x58] sm:$0xff]
  %623 = vmatprep.subr.mxu0 %v352
  %624 = vmatpush1.msra.mxu0 %v351
  %625 = vmatprep.subr.mxu0 %v356
  %626 = vmatpush1.msra.mxu0 %v355
  %627 = vmatprep.subr.mxu0 %v360
  %628 = vmatpush1.msra.mxu0 %v359
  %629 = vmatprep.subr.mxu0 %v364
  %630 = vmatpush1.msra.mxu0 %v363
  %631 = vmatprep.subr.mxu0 %v368
  %632 = vmatpush1.msra.mxu0 %v367
  %633 = vmatprep.subr.mxu0 %v372
  %634 = vmatpush1.msra.mxu0 %v371
  %635 = vmatprep.subr.mxu0 %v376
  %636 = vmatpush1.msra.mxu0 %v375
  %637 = vmatprep.subr.mxu0 %v380
  %638 = vmatpush1.msra.mxu0 %v379
  %639 = vmatprep.subr.mxu0 %v384
  %640 = vmatpush1.msra.mxu0 %v383
  %641 = vmatprep.subr.mxu0 %v388
  %642 = vmatpush1.msra.mxu0 %v387
  %643 = vmatprep.subr.mxu0 %v392
  %644 = vmatpush1.msra.mxu0 %v391
  %645 = vmatprep.subr.mxu0 %v396
  %646 = vmatpush1.msra.mxu0 %v395
  %647 = vmatprep.subr.mxu0 %v400
  %648 = vmatpush1.msra.mxu0 %v399
  %649 = vmatprep.subr.mxu0 %v404
  %650 = vmatpush1.msra.mxu0 %v403
  %651 = vmatprep.subr.mxu0 %v408
  %652 = vmatpush1.msra.mxu0 %v407
  %653 = vmatprep.subr.mxu0 %v412
  %654 = vmatpush1.msra.mxu0 %v411
  %655 = vmatprep.subr.mxu0 0.0
  %656 = vmatpush1.msra.mxu0 0.0
  %657 = vmatprep.subr.mxu0 0.0
  %658 = vmatpush1.msra.mxu0 0.0
  %659 = vmatprep.subr.mxu0 0.0
  %660 = vmatpush1.msra.mxu0 0.0
  %661 = vmatprep.subr.mxu0 0.0
  %662 = vmatpush1.msra.mxu0 0.0
  %663 = vmatprep.subr.mxu0 0.0
  %664 = vmatpush1.msra.mxu0 0.0
  %665 = vmatprep.subr.mxu0 0.0
  %666 = vmatpush1.msra.mxu0 0.0
  %667 = vmatprep.subr.mxu0 0.0
  %668 = vmatpush1.msra.mxu0 0.0
  %669 = vmatprep.subr.mxu0 0.0
  %670 = vmatpush1.msra.mxu0 0.0
  %671 = vmatprep.subr.mxu0 0.0
  %672 = vmatpush1.msra.mxu0 0.0
  %673 = vmatprep.subr.mxu0 0.0
  %674 = vmatpush1.msra.mxu0 0.0
  %675 = vmatprep.subr.mxu0 0.0
  %676 = vmatpush1.msra.mxu0 0.0
  %677 = vmatprep.subr.mxu0 0.0
  %678 = vmatpush1.msra.mxu0 0.0
  %679 = vmatprep.subr.mxu0 0.0
  %680 = vmatpush1.msra.mxu0 0.0
  %681 = vmatprep.subr.mxu0 0.0
  %682 = vmatpush1.msra.mxu0 0.0
  %683 = vmatprep.subr.mxu0 0.0
  %684 = vmatpush1.msra.mxu0 0.0
  %685 = vmatprep.subr.mxu0 0.0
  %686 = vmatpush1.msra.mxu0 0.0
  %687 = vmatprep.mubr.f32.mxu0 0.0
  %688 = vmatmul.mubr.f32.gmra.mrb[0].mxu0 %v617
  %v689 = vpop.f32.mrb[0].mxu0
  %v690 = vadd.f32 %v619, %v689
  %v691 = vpop.f32.mrb[0].mxu0
  %v692 = vadd.f32 %v620, %v691
  %693 = vdwg.mxu0
  %694 = vmatprep.subr.mxu0 %v354
  %695 = vmatpush1.msra.mxu0 %v353
  %696 = vmatprep.subr.mxu0 %v358
  %697 = vmatpush1.msra.mxu0 %v357
  %698 = vmatprep.subr.mxu0 %v362
  %699 = vmatpush1.msra.mxu0 %v361
  %700 = vmatprep.subr.mxu0 %v366
  %701 = vmatpush1.msra.mxu0 %v365
  %702 = vmatprep.subr.mxu0 %v370
  %703 = vmatpush1.msra.mxu0 %v369
  %704 = vmatprep.subr.mxu0 %v374
  %705 = vmatpush1.msra.mxu0 %v373
  %706 = vmatprep.subr.mxu0 %v378
  %707 = vmatpush1.msra.mxu0 %v377
  %708 = vmatprep.subr.mxu0 %v382
  %709 = vmatpush1.msra.mxu0 %v381
  %710 = vmatprep.subr.mxu0 %v386
  %711 = vmatpush1.msra.mxu0 %v385
  %712 = vmatprep.subr.mxu0 %v390
  %713 = vmatpush1.msra.mxu0 %v389
  %714 = vmatprep.subr.mxu0 %v394
  %715 = vmatpush1.msra.mxu0 %v393
  %716 = vmatprep.subr.mxu0 %v398
  %717 = vmatpush1.msra.mxu0 %v397
  %718 = vmatprep.subr.mxu0 %v402
  %719 = vmatpush1.msra.mxu0 %v401
  %720 = vmatprep.subr.mxu0 %v406
  %721 = vmatpush1.msra.mxu0 %v405
  %722 = vmatprep.subr.mxu0 %v410
  %723 = vmatpush1.msra.mxu0 %v409
  %724 = vmatprep.subr.mxu0 %v414
  %725 = vmatpush1.msra.mxu0 %v413
  %726 = vmatprep.subr.mxu0 0.0
  %727 = vmatpush1.msra.mxu0 0.0
  %728 = vmatprep.subr.mxu0 0.0
  %729 = vmatpush1.msra.mxu0 0.0
  %730 = vmatprep.subr.mxu0 0.0
  %731 = vmatpush1.msra.mxu0 0.0
  %732 = vmatprep.subr.mxu0 0.0
  %733 = vmatpush1.msra.mxu0 0.0
  %734 = vmatprep.subr.mxu0 0.0
  %735 = vmatpush1.msra.mxu0 0.0
  %736 = vmatprep.subr.mxu0 0.0
  %737 = vmatpush1.msra.mxu0 0.0
  %738 = vmatprep.subr.mxu0 0.0
  %739 = vmatpush1.msra.mxu0 0.0
  %740 = vmatprep.subr.mxu0 0.0
  %741 = vmatpush1.msra.mxu0 0.0
  %742 = vmatprep.subr.mxu0 0.0
  %743 = vmatpush1.msra.mxu0 0.0
  %744 = vmatprep.subr.mxu0 0.0
  %745 = vmatpush1.msra.mxu0 0.0
  %746 = vmatprep.subr.mxu0 0.0
  %747 = vmatpush1.msra.mxu0 0.0
  %748 = vmatprep.subr.mxu0 0.0
  %749 = vmatpush1.msra.mxu0 0.0
  %750 = vmatprep.subr.mxu0 0.0
  %751 = vmatpush1.msra.mxu0 0.0
  %752 = vmatprep.subr.mxu0 0.0
  %753 = vmatpush1.msra.mxu0 0.0
  %754 = vmatprep.subr.mxu0 0.0
  %755 = vmatpush1.msra.mxu0 0.0
  %756 = vmatprep.subr.mxu0 0.0
  %757 = vmatpush1.msra.mxu0 0.0
  %758 = vmatprep.mubr.f32.mxu0 0.0
  %759 = vmatmul.mubr.f32.gmra.mrb[0].mxu0 %v617
  %v760 = vpop.f32.mrb[0].mxu0
  %v761 = vadd.f32 %v621, %v760
  %v762 = vpop.f32.mrb[0].mxu0
  %v763 = vadd.f32 %v622, %v762
  %764 = vdwg.mxu0
  %v765 = vxor.u32 %v690, 2147483648
  %v766 = vxor.u32 %v692, 2147483648
  %v767 = vxor.u32 %v761, 2147483648
  %v768 = vmul.f32 %v765, 1.442695
  %v769 = vpow.pop %v768
  %v770 = vmul.f32 %v766, 1.442695
  %v771 = vpow.pop %v770
  %v772 = vmul.f32 %v767, 1.442695
  %v773 = vpow.pop %v772
  %v774 = vadd.f32 %v769, 1.0
  %v775 = vadd.f32 %v771, 1.0
  %v776 = vadd.f32 %v773, 1.0
  %v777 = vrcp.pop %v774
  %v778 = vmul.f32 1.0, %v777
  %v779 = vrcp.pop %v775
  %v780 = vmul.f32 1.0, %v779
  %v781 = vrcp.pop %v776
  %v782 = vmul.f32 1.0, %v781
  %v783 = vtanh.pop %v763
  %v784 = vmul.f32 %v780, %v615
  %v785 = vmul.f32 %v778, %v783
  %v786 = vadd.f32 %v784, %v785
  %v787 = vtanh.pop %v786
  %v788 = vmul.f32 %v782, %v787
  %789 = vst [vmem:[#allocation3 + $0x8] sm:$0xff] %v788
  %v790 = vld [vmem:[#allocation2 + $0x60] sm:$0xff]
  %v791 = vld [vmem:[#allocation2 + $0x68] sm:$0xff]
  %v792 = vld [vmem:[#allocation2 + $0x70] sm:$0xff]
  %v793 = vld [vmem:[#allocation2 + $0x78] sm:$0xff]
  %794 = vmatprep.subr.mxu0 %v352
  %795 = vmatpush1.msra.mxu0 %v351
  %796 = vmatprep.subr.mxu0 %v356
  %797 = vmatpush1.msra.mxu0 %v355
  %798 = vmatprep.subr.mxu0 %v360
  %799 = vmatpush1.msra.mxu0 %v359
  %800 = vmatprep.subr.mxu0 %v364
  %801 = vmatpush1.msra.mxu0 %v363
  %802 = vmatprep.subr.mxu0 %v368
  %803 = vmatpush1.msra.mxu0 %v367
  %804 = vmatprep.subr.mxu0 %v372
  %805 = vmatpush1.msra.mxu0 %v371
  %806 = vmatprep.subr.mxu0 %v376
  %807 = vmatpush1.msra.mxu0 %v375
  %808 = vmatprep.subr.mxu0 %v380
  %809 = vmatpush1.msra.mxu0 %v379
  %810 = vmatprep.subr.mxu0 %v384
  %811 = vmatpush1.msra.mxu0 %v383
  %812 = vmatprep.subr.mxu0 %v388
  %813 = vmatpush1.msra.mxu0 %v387
  %814 = vmatprep.subr.mxu0 %v392
  %815 = vmatpush1.msra.mxu0 %v391
  %816 = vmatprep.subr.mxu0 %v396
  %817 = vmatpush1.msra.mxu0 %v395
  %818 = vmatprep.subr.mxu0 %v400
  %819 = vmatpush1.msra.mxu0 %v399
  %820 = vmatprep.subr.mxu0 %v404
  %821 = vmatpush1.msra.mxu0 %v403
  %822 = vmatprep.subr.mxu0 %v408
  %823 = vmatpush1.msra.mxu0 %v407
  %824 = vmatprep.subr.mxu0 %v412
  %825 = vmatpush1.msra.mxu0 %v411
  %826 = vmatprep.subr.mxu0 0.0
  %827 = vmatpush1.msra.mxu0 0.0
  %828 = vmatprep.subr.mxu0 0.0
  %829 = vmatpush1.msra.mxu0 0.0
  %830 = vmatprep.subr.mxu0 0.0
  %831 = vmatpush1.msra.mxu0 0.0
  %832 = vmatprep.subr.mxu0 0.0
  %833 = vmatpush1.msra.mxu0 0.0
  %834 = vmatprep.subr.mxu0 0.0
  %835 = vmatpush1.msra.mxu0 0.0
  %836 = vmatprep.subr.mxu0 0.0
  %837 = vmatpush1.msra.mxu0 0.0
  %838 = vmatprep.subr.mxu0 0.0
  %839 = vmatpush1.msra.mxu0 0.0
  %840 = vmatprep.subr.mxu0 0.0
  %841 = vmatpush1.msra.mxu0 0.0
  %842 = vmatprep.subr.mxu0 0.0
  %843 = vmatpush1.msra.mxu0 0.0
  %844 = vmatprep.subr.mxu0 0.0
  %845 = vmatpush1.msra.mxu0 0.0
  %846 = vmatprep.subr.mxu0 0.0
  %847 = vmatpush1.msra.mxu0 0.0
  %848 = vmatprep.subr.mxu0 0.0
  %849 = vmatpush1.msra.mxu0 0.0
  %850 = vmatprep.subr.mxu0 0.0
  %851 = vmatpush1.msra.mxu0 0.0
  %852 = vmatprep.subr.mxu0 0.0
  %853 = vmatpush1.msra.mxu0 0.0
  %854 = vmatprep.subr.mxu0 0.0
  %855 = vmatpush1.msra.mxu0 0.0
  %856 = vmatprep.subr.mxu0 0.0
  %857 = vmatpush1.msra.mxu0 0.0
  %858 = vmatprep.mubr.f32.mxu0 0.0
  %859 = vmatmul.mubr.f32.gmra.mrb[0].mxu0 %v788
  %v860 = vpop.f32.mrb[0].mxu0
  %v861 = vadd.f32 %v790, %v860
  %v862 = vpop.f32.mrb[0].mxu0
  %v863 = vadd.f32 %v791, %v862
  %864 = vdwg.mxu0
  %865 = vmatprep.subr.mxu0 %v354
  %866 = vmatpush1.msra.mxu0 %v353
  %867 = vmatprep.subr.mxu0 %v358
  %868 = vmatpush1.msra.mxu0 %v357
  %869 = vmatprep.subr.mxu0 %v362
  %870 = vmatpush1.msra.mxu0 %v361
  %871 = vmatprep.subr.mxu0 %v366
  %872 = vmatpush1.msra.mxu0 %v365
  %873 = vmatprep.subr.mxu0 %v370
  %874 = vmatpush1.msra.mxu0 %v369
  %875 = vmatprep.subr.mxu0 %v374
  %876 = vmatpush1.msra.mxu0 %v373
  %877 = vmatprep.subr.mxu0 %v378
  %878 = vmatpush1.msra.mxu0 %v377
  %879 = vmatprep.subr.mxu0 %v382
  %880 = vmatpush1.msra.mxu0 %v381
  %881 = vmatprep.subr.mxu0 %v386
  %882 = vmatpush1.msra.mxu0 %v385
  %883 = vmatprep.subr.mxu0 %v390
  %884 = vmatpush1.msra.mxu0 %v389
  %885 = vmatprep.subr.mxu0 %v394
  %886 = vmatpush1.msra.mxu0 %v393
  %887 = vmatprep.subr.mxu0 %v398
  %888 = vmatpush1.msra.mxu0 %v397
  %889 = vmatprep.subr.mxu0 %v402
  %890 = vmatpush1.msra.mxu0 %v401
  %891 = vmatprep.subr.mxu0 %v406
  %892 = vmatpush1.msra.mxu0 %v405
  %893 = vmatprep.subr.mxu0 %v410
  %894 = vmatpush1.msra.mxu0 %v409
  %895 = vmatprep.subr.mxu0 %v414
  %896 = vmatpush1.msra.mxu0 %v413
  %897 = vmatprep.subr.mxu0 0.0
  %898 = vmatpush1.msra.mxu0 0.0
  %899 = vmatprep.subr.mxu0 0.0
  %900 = vmatpush1.msra.mxu0 0.0
  %901 = vmatprep.subr.mxu0 0.0
  %902 = vmatpush1.msra.mxu0 0.0
  %903 = vmatprep.subr.mxu0 0.0
  %904 = vmatpush1.msra.mxu0 0.0
  %905 = vmatprep.subr.mxu0 0.0
  %906 = vmatpush1.msra.mxu0 0.0
  %907 = vmatprep.subr.mxu0 0.0
  %908 = vmatpush1.msra.mxu0 0.0
  %909 = vmatprep.subr.mxu0 0.0
  %910 = vmatpush1.msra.mxu0 0.0
  %911 = vmatprep.subr.mxu0 0.0
  %912 = vmatpush1.msra.mxu0 0.0
  %913 = vmatprep.subr.mxu0 0.0
  %914 = vmatpush1.msra.mxu0 0.0
  %915 = vmatprep.subr.mxu0 0.0
  %916 = vmatpush1.msra.mxu0 0.0
  %917 = vmatprep.subr.mxu0 0.0
  %918 = vmatpush1.msra.mxu0 0.0
  %919 = vmatprep.subr.mxu0 0.0
  %920 = vmatpush1.msra.mxu0 0.0
  %921 = vmatprep.subr.mxu0 0.0
  %922 = vmatpush1.msra.mxu0 0.0
  %923 = vmatprep.subr.mxu0 0.0
  %924 = vmatpush1.msra.mxu0 0.0
  %925 = vmatprep.subr.mxu0 0.0
  %926 = vmatpush1.msra.mxu0 0.0
  %927 = vmatprep.subr.mxu0 0.0
  %928 = vmatpush1.msra.mxu0 0.0
  %929 = vmatprep.mubr.f32.mxu0 0.0
  %930 = vmatmul.mubr.f32.gmra.mrb[0].mxu0 %v788
  %v931 = vpop.f32.mrb[0].mxu0
  %v932 = vadd.f32 %v792, %v931
  %v933 = vpop.f32.mrb[0].mxu0
  %v934 = vadd.f32 %v793, %v933
  %935 = vdwg.mxu0
  %v936 = vxor.u32 %v861, 2147483648
  %v937 = vxor.u32 %v863, 2147483648
  %v938 = vxor.u32 %v932, 2147483648
  %v939 = vmul.f32 %v936, 1.442695
  %v940 = vpow.pop %v939
  %v941 = vmul.f32 %v937, 1.442695
  %v942 = vpow.pop %v941
  %v943 = vmul.f32 %v938, 1.442695
  %v944 = vpow.pop %v943
  %v945 = vadd.f32 %v940, 1.0
  %v946 = vadd.f32 %v942, 1.0
  %v947 = vadd.f32 %v944, 1.0
  %v948 = vrcp.pop %v945
  %v949 = vmul.f32 1.0, %v948
  %v950 = vrcp.pop %v946
  %v951 = vmul.f32 1.0, %v950
  %v952 = vrcp.pop %v947
  %v953 = vmul.f32 1.0, %v952
  %v954 = vtanh.pop %v934
  %v955 = vmul.f32 %v951, %v786
  %v956 = vmul.f32 %v949, %v954
  %v957 = vadd.f32 %v955, %v956
  %v958 = vtanh.pop %v957
  %v959 = vmul.f32 %v953, %v958
  %960 = vst [vmem:[#allocation3 + $0x10] sm:$0xff] %v959
  %v961 = vld [vmem:[#allocation2 + $0x80] sm:$0xff]
  %v962 = vld [vmem:[#allocation2 + $0x88] sm:$0xff]
  %v963 = vld [vmem:[#allocation2 + $0x90] sm:$0xff]
  %v964 = vld [vmem:[#allocation2 + $0x98] sm:$0xff]
  %965 = vmatprep.subr.mxu0 %v352
  %966 = vmatpush1.msra.mxu0 %v351
  %967 = vmatprep.subr.mxu0 %v356
  %968 = vmatpush1.msra.mxu0 %v355
  %969 = vmatprep.subr.mxu0 %v360
  %970 = vmatpush1.msra.mxu0 %v359
  %971 = vmatprep.subr.mxu0 %v364
  %972 = vmatpush1.msra.mxu0 %v363
  %973 = vmatprep.subr.mxu0 %v368
  %974 = vmatpush1.msra.mxu0 %v367
  %975 = vmatprep.subr.mxu0 %v372
  %976 = vmatpush1.msra.mxu0 %v371
  %977 = vmatprep.subr.mxu0 %v376
  %978 = vmatpush1.msra.mxu0 %v375
  %979 = vmatprep.subr.mxu0 %v380
  %980 = vmatpush1.msra.mxu0 %v379
  %981 = vmatprep.subr.mxu0 %v384
  %982 = vmatpush1.msra.mxu0 %v383
  %983 = vmatprep.subr.mxu0 %v388
  %984 = vmatpush1.msra.mxu0 %v387
  %985 = vmatprep.subr.mxu0 %v392
  %986 = vmatpush1.msra.mxu0 %v391
  %987 = vmatprep.subr.mxu0 %v396
  %988 = vmatpush1.msra.mxu0 %v395
  %989 = vmatprep.subr.mxu0 %v400
  %990 = vmatpush1.msra.mxu0 %v399
  %991 = vmatprep.subr.mxu0 %v404
  %992 = vmatpush1.msra.mxu0 %v403
  %993 = vmatprep.subr.mxu0 %v408
  %994 = vmatpush1.msra.mxu0 %v407
  %995 = vmatprep.subr.mxu0 %v412
  %996 = vmatpush1.msra.mxu0 %v411
  %997 = vmatprep.subr.mxu0 0.0
  %998 = vmatpush1.msra.mxu0 0.0
  %999 = vmatprep.subr.mxu0 0.0
  %1000 = vmatpush1.msra.mxu0 0.0
  %1001 = vmatprep.subr.mxu0 0.0
  %1002 = vmatpush1.msra.mxu0 0.0
  %1003 = vmatprep.subr.mxu0 0.0
  %1004 = vmatpush1.msra.mxu0 0.0
  %1005 = vmatprep.subr.mxu0 0.0
  %1006 = vmatpush1.msra.mxu0 0.0
  %1007 = vmatprep.subr.mxu0 0.0
  %1008 = vmatpush1.msra.mxu0 0.0
  %1009 = vmatprep.subr.mxu0 0.0
  %1010 = vmatpush1.msra.mxu0 0.0
  %1011 = vmatprep.subr.mxu0 0.0
  %1012 = vmatpush1.msra.mxu0 0.0
  %1013 = vmatprep.subr.mxu0 0.0
  %1014 = vmatpush1.msra.mxu0 0.0
  %1015 = vmatprep.subr.mxu0 0.0
  %1016 = vmatpush1.msra.mxu0 0.0
  %1017 = vmatprep.subr.mxu0 0.0
  %1018 = vmatpush1.msra.mxu0 0.0
  %1019 = vmatprep.subr.mxu0 0.0
  %1020 = vmatpush1.msra.mxu0 0.0
  %1021 = vmatprep.subr.mxu0 0.0
  %1022 = vmatpush1.msra.mxu0 0.0
  %1023 = vmatprep.subr.mxu0 0.0
  %1024 = vmatpush1.msra.mxu0 0.0
  %1025 = vmatprep.subr.mxu0 0.0
  %1026 = vmatpush1.msra.mxu0 0.0
  %1027 = vmatprep.subr.mxu0 0.0
  %1028 = vmatpush1.msra.mxu0 0.0
  %1029 = vmatprep.mubr.f32.mxu0 0.0
  %1030 = vmatmul.mubr.f32.gmra.mrb[0].mxu0 %v959
  %v1031 = vpop.f32.mrb[0].mxu0
  %v1032 = vadd.f32 %v961, %v1031
  %v1033 = vpop.f32.mrb[0].mxu0
  %v1034 = vadd.f32 %v962, %v1033
  %1035 = vdwg.mxu0
  %1036 = vmatprep.subr.mxu0 %v354
  %1037 = vmatpush1.msra.mxu0 %v353
  %1038 = vmatprep.subr.mxu0 %v358
  %1039 = vmatpush1.msra.mxu0 %v357
  %1040 = vmatprep.subr.mxu0 %v362
  %1041 = vmatpush1.msra.mxu0 %v361
  %1042 = vmatprep.subr.mxu0 %v366
  %1043 = vmatpush1.msra.mxu0 %v365
  %1044 = vmatprep.subr.mxu0 %v370
  %1045 = vmatpush1.msra.mxu0 %v369
  %1046 = vmatprep.subr.mxu0 %v374
  %1047 = vmatpush1.msra.mxu0 %v373
  %1048 = vmatprep.subr.mxu0 %v378
  %1049 = vmatpush1.msra.mxu0 %v377
  %1050 = vmatprep.subr.mxu0 %v382
  %1051 = vmatpush1.msra.mxu0 %v381
  %1052 = vmatprep.subr.mxu0 %v386
  %1053 = vmatpush1.msra.mxu0 %v385
  %1054 = vmatprep.subr.mxu0 %v390
  %1055 = vmatpush1.msra.mxu0 %v389
  %1056 = vmatprep.subr.mxu0 %v394
  %1057 = vmatpush1.msra.mxu0 %v393
  %1058 = vmatprep.subr.mxu0 %v398
  %1059 = vmatpush1.msra.mxu0 %v397
  %1060 = vmatprep.subr.mxu0 %v402
  %1061 = vmatpush1.msra.mxu0 %v401
  %1062 = vmatprep.subr.mxu0 %v406
  %1063 = vmatpush1.msra.mxu0 %v405
  %1064 = vmatprep.subr.mxu0 %v410
  %1065 = vmatpush1.msra.mxu0 %v409
  %1066 = vmatprep.subr.mxu0 %v414
  %1067 = vmatpush1.msra.mxu0 %v413
  %1068 = vmatprep.subr.mxu0 0.0
  %1069 = vmatpush1.msra.mxu0 0.0
  %1070 = vmatprep.subr.mxu0 0.0
  %1071 = vmatpush1.msra.mxu0 0.0
  %1072 = vmatprep.subr.mxu0 0.0
  %1073 = vmatpush1.msra.mxu0 0.0
  %1074 = vmatprep.subr.mxu0 0.0
  %1075 = vmatpush1.msra.mxu0 0.0
  %1076 = vmatprep.subr.mxu0 0.0
  %1077 = vmatpush1.msra.mxu0 0.0
  %1078 = vmatprep.subr.mxu0 0.0
  %1079 = vmatpush1.msra.mxu0 0.0
  %1080 = vmatprep.subr.mxu0 0.0
  %1081 = vmatpush1.msra.mxu0 0.0
  %1082 = vmatprep.subr.mxu0 0.0
  %1083 = vmatpush1.msra.mxu0 0.0
  %1084 = vmatprep.subr.mxu0 0.0
  %1085 = vmatpush1.msra.mxu0 0.0
  %1086 = vmatprep.subr.mxu0 0.0
  %1087 = vmatpush1.msra.mxu0 0.0
  %1088 = vmatprep.subr.mxu0 0.0
  %1089 = vmatpush1.msra.mxu0 0.0
  %1090 = vmatprep.subr.mxu0 0.0
  %1091 = vmatpush1.msra.mxu0 0.0
  %1092 = vmatprep.subr.mxu0 0.0
  %1093 = vmatpush1.msra.mxu0 0.0
  %1094 = vmatprep.subr.mxu0 0.0
  %1095 = vmatpush1.msra.mxu0 0.0
  %1096 = vmatprep.subr.mxu0 0.0
  %1097 = vmatpush1.msra.mxu0 0.0
  %1098 = vmatprep.subr.mxu0 0.0
  %1099 = vmatpush1.msra.mxu0 0.0
  %1100 = vmatprep.mubr.f32.mxu0 0.0
  %1101 = vmatmul.mubr.f32.gmra.mrb[0].mxu0 %v959
  %v1102 = vpop.f32.mrb[0].mxu0
  %v1103 = vadd.f32 %v963, %v1102
  %v1104 = vpop.f32.mrb[0].mxu0
  %v1105 = vadd.f32 %v964, %v1104
  %1106 = vdwg.mxu0
  %v1107 = vxor.u32 %v1032, 2147483648
  %v1108 = vxor.u32 %v1034, 2147483648
  %v1109 = vxor.u32 %v1103, 2147483648
  %v1110 = vmul.f32 %v1107, 1.442695
  %v1111 = vpow.pop %v1110
  %v1112 = vmul.f32 %v1108, 1.442695
  %v1113 = vpow.pop %v1112
  %v1114 = vmul.f32 %v1109, 1.442695
  %v1115 = vpow.pop %v1114
  %v1116 = vadd.f32 %v1111, 1.0
  %v1117 = vadd.f32 %v1113, 1.0
  %v1118 = vadd.f32 %v1115, 1.0
  %v1119 = vrcp.pop %v1116
  %v1120 = vmul.f32 1.0, %v1119
  %v1121 = vrcp.pop %v1117
  %v1122 = vmul.f32 1.0, %v1121
  %v1123 = vrcp.pop %v1118
  %v1124 = vmul.f32 1.0, %v1123
  %v1125 = vtanh.pop %v1105
  %v1126 = vmul.f32 %v1122, %v957
  %v1127 = vmul.f32 %v1120, %v1125
  %v1128 = vadd.f32 %v1126, %v1127
  %v1129 = vtanh.pop %v1128
  %v1130 = vmul.f32 %v1124, %v1129
  %1131 = vst [vmem:[#allocation3 + $0x18] sm:$0xff] %v1130
  %v1132 = vld [vmem:[#allocation2 + $0xa0] sm:$0xff]
  %v1133 = vld [vmem:[#allocation2 + $0xa8] sm:$0xff]
  %v1134 = vld [vmem:[#allocation2 + $0xb0] sm:$0xff]
  %v1135 = vld [vmem:[#allocation2 + $0xb8] sm:$0xff]
  %1136 = vmatprep.subr.mxu0 %v352
  %1137 = vmatpush1.msra.mxu0 %v351
  %1138 = vmatprep.subr.mxu0 %v356
  %1139 = vmatpush1.msra.mxu0 %v355
  %1140 = vmatprep.subr.mxu0 %v360
  %1141 = vmatpush1.msra.mxu0 %v359
  %1142 = vmatprep.subr.mxu0 %v364
  %1143 = vmatpush1.msra.mxu0 %v363
  %1144 = vmatprep.subr.mxu0 %v368
  %1145 = vmatpush1.msra.mxu0 %v367
  %1146 = vmatprep.subr.mxu0 %v372
  %1147 = vmatpush1.msra.mxu0 %v371
  %1148 = vmatprep.subr.mxu0 %v376
  %1149 = vmatpush1.msra.mxu0 %v375
  %1150 = vmatprep.subr.mxu0 %v380
  %1151 = vmatpush1.msra.mxu0 %v379
  %1152 = vmatprep.subr.mxu0 %v384
  %1153 = vmatpush1.msra.mxu0 %v383
  %1154 = vmatprep.subr.mxu0 %v388
  %1155 = vmatpush1.msra.mxu0 %v387
  %1156 = vmatprep.subr.mxu0 %v392
  %1157 = vmatpush1.msra.mxu0 %v391
  %1158 = vmatprep.subr.mxu0 %v396
  %1159 = vmatpush1.msra.mxu0 %v395
  %1160 = vmatprep.subr.mxu0 %v400
  %1161 = vmatpush1.msra.mxu0 %v399
  %1162 = vmatprep.subr.mxu0 %v404
  %1163 = vmatpush1.msra.mxu0 %v403
  %1164 = vmatprep.subr.mxu0 %v408
  %1165 = vmatpush1.msra.mxu0 %v407
  %1166 = vmatprep.subr.mxu0 %v412
  %1167 = vmatpush1.msra.mxu0 %v411
  %1168 = vmatprep.subr.mxu0 0.0
  %1169 = vmatpush1.msra.mxu0 0.0
  %1170 = vmatprep.subr.mxu0 0.0
  %1171 = vmatpush1.msra.mxu0 0.0
  %1172 = vmatprep.subr.mxu0 0.0
  %1173 = vmatpush1.msra.mxu0 0.0
  %1174 = vmatprep.subr.mxu0 0.0
  %1175 = vmatpush1.msra.mxu0 0.0
  %1176 = vmatprep.subr.mxu0 0.0
  %1177 = vmatpush1.msra.mxu0 0.0
  %1178 = vmatprep.subr.mxu0 0.0
  %1179 = vmatpush1.msra.mxu0 0.0
  %1180 = vmatprep.subr.mxu0 0.0
  %1181 = vmatpush1.msra.mxu0 0.0
  %1182 = vmatprep.subr.mxu0 0.0
  %1183 = vmatpush1.msra.mxu0 0.0
  %1184 = vmatprep.subr.mxu0 0.0
  %1185 = vmatpush1.msra.mxu0 0.0
  %1186 = vmatprep.subr.mxu0 0.0
  %1187 = vmatpush1.msra.mxu0 0.0
  %1188 = vmatprep.subr.mxu0 0.0
  %1189 = vmatpush1.msra.mxu0 0.0
  %1190 = vmatprep.subr.mxu0 0.0
  %1191 = vmatpush1.msra.mxu0 0.0
  %1192 = vmatprep.subr.mxu0 0.0
  %1193 = vmatpush1.msra.mxu0 0.0
  %1194 = vmatprep.subr.mxu0 0.0
  %1195 = vmatpush1.msra.mxu0 0.0
  %1196 = vmatprep.subr.mxu0 0.0
  %1197 = vmatpush1.msra.mxu0 0.0
  %1198 = vmatprep.subr.mxu0 0.0
  %1199 = vmatpush1.msra.mxu0 0.0
  %1200 = vmatprep.mubr.f32.mxu0 0.0
  %1201 = vmatmul.mubr.f32.gmra.mrb[0].mxu0 %v1130
  %v1202 = vpop.f32.mrb[0].mxu0
  %v1203 = vadd.f32 %v1132, %v1202
  %v1204 = vpop.f32.mrb[0].mxu0
  %v1205 = vadd.f32 %v1133, %v1204
  %1206 = vdwg.mxu0
  %1207 = vmatprep.subr.mxu0 %v354
  %1208 = vmatpush1.msra.mxu0 %v353
  %1209 = vmatprep.subr.mxu0 %v358
  %1210 = vmatpush1.msra.mxu0 %v357
  %1211 = vmatprep.subr.mxu0 %v362
  %1212 = vmatpush1.msra.mxu0 %v361
  %1213 = vmatprep.subr.mxu0 %v366
  %1214 = vmatpush1.msra.mxu0 %v365
  %1215 = vmatprep.subr.mxu0 %v370
  %1216 = vmatpush1.msra.mxu0 %v369
  %1217 = vmatprep.subr.mxu0 %v374
  %1218 = vmatpush1.msra.mxu0 %v373
  %1219 = vmatprep.subr.mxu0 %v378
  %1220 = vmatpush1.msra.mxu0 %v377
  %1221 = vmatprep.subr.mxu0 %v382
  %1222 = vmatpush1.msra.mxu0 %v381
  %1223 = vmatprep.subr.mxu0 %v386
  %1224 = vmatpush1.msra.mxu0 %v385
  %1225 = vmatprep.subr.mxu0 %v390
  %1226 = vmatpush1.msra.mxu0 %v389
  %1227 = vmatprep.subr.mxu0 %v394
  %1228 = vmatpush1.msra.mxu0 %v393
  %1229 = vmatprep.subr.mxu0 %v398
  %1230 = vmatpush1.msra.mxu0 %v397
  %1231 = vmatprep.subr.mxu0 %v402
  %1232 = vmatpush1.msra.mxu0 %v401
  %1233 = vmatprep.subr.mxu0 %v406
  %1234 = vmatpush1.msra.mxu0 %v405
  %1235 = vmatprep.subr.mxu0 %v410
  %1236 = vmatpush1.msra.mxu0 %v409
  %1237 = vmatprep.subr.mxu0 %v414
  %1238 = vmatpush1.msra.mxu0 %v413
  %1239 = vmatprep.subr.mxu0 0.0
  %1240 = vmatpush1.msra.mxu0 0.0
  %1241 = vmatprep.subr.mxu0 0.0
  %1242 = vmatpush1.msra.mxu0 0.0
  %1243 = vmatprep.subr.mxu0 0.0
  %1244 = vmatpush1.msra.mxu0 0.0
  %1245 = vmatprep.subr.mxu0 0.0
  %1246 = vmatpush1.msra.mxu0 0.0
  %1247 = vmatprep.subr.mxu0 0.0
  %1248 = vmatpush1.msra.mxu0 0.0
  %1249 = vmatprep.subr.mxu0 0.0
  %1250 = vmatpush1.msra.mxu0 0.0
  %1251 = vmatprep.subr.mxu0 0.0
  %1252 = vmatpush1.msra.mxu0 0.0
  %1253 = vmatprep.subr.mxu0 0.0
  %1254 = vmatpush1.msra.mxu0 0.0
  %1255 = vmatprep.subr.mxu0 0.0
  %1256 = vmatpush1.msra.mxu0 0.0
  %1257 = vmatprep.subr.mxu0 0.0
  %1258 = vmatpush1.msra.mxu0 0.0
  %1259 = vmatprep.subr.mxu0 0.0
  %1260 = vmatpush1.msra.mxu0 0.0
  %1261 = vmatprep.subr.mxu0 0.0
  %1262 = vmatpush1.msra.mxu0 0.0
  %1263 = vmatprep.subr.mxu0 0.0
  %1264 = vmatpush1.msra.mxu0 0.0
  %1265 = vmatprep.subr.mxu0 0.0
  %1266 = vmatpush1.msra.mxu0 0.0
  %1267 = vmatprep.subr.mxu0 0.0
  %1268 = vmatpush1.msra.mxu0 0.0
  %1269 = vmatprep.subr.mxu0 0.0
  %1270 = vmatpush1.msra.mxu0 0.0
  %1271 = vmatprep.mubr.f32.mxu0 0.0
  %1272 = vmatmul.mubr.f32.gmra.mrb[0].mxu0 %v1130
  %v1273 = vpop.f32.mrb[0].mxu0
  %v1274 = vadd.f32 %v1134, %v1273
  %v1275 = vpop.f32.mrb[0].mxu0
  %v1276 = vadd.f32 %v1135, %v1275
  %1277 = vdwg.mxu0
  %v1278 = vxor.u32 %v1203, 2147483648
  %v1279 = vxor.u32 %v1205, 2147483648
  %v1280 = vxor.u32 %v1274, 2147483648
  %v1281 = vmul.f32 %v1278, 1.442695
  %v1282 = vpow.pop %v1281
  %v1283 = vmul.f32 %v1279, 1.442695
  %v1284 = vpow.pop %v1283
  %v1285 = vmul.f32 %v1280, 1.442695
  %v1286 = vpow.pop %v1285
  %v1287 = vadd.f32 %v1282, 1.0
  %v1288 = vadd.f32 %v1284, 1.0
  %v1289 = vadd.f32 %v1286, 1.0
  %v1290 = vrcp.pop %v1287
  %v1291 = vmul.f32 1.0, %v1290
  %v1292 = vrcp.pop %v1288
  %v1293 = vmul.f32 1.0, %v1292
  %v1294 = vrcp.pop %v1289
  %v1295 = vmul.f32 1.0, %v1294
  %v1296 = vtanh.pop %v1276
  %v1297 = vmul.f32 %v1293, %v1128
  %v1298 = vmul.f32 %v1291, %v1296
  %v1299 = vadd.f32 %v1297, %v1298
  %v1300 = vtanh.pop %v1299
  %v1301 = vmul.f32 %v1295, %v1300
  %1302 = vst [vmem:[#allocation3 + $0x20] sm:$0xff] %v1301
  %v1303 = vld [vmem:[#allocation2 + $0xc0] sm:$0xff]
  %v1304 = vld [vmem:[#allocation2 + $0xc8] sm:$0xff]
  %v1305 = vld [vmem:[#allocation2 + $0xd0] sm:$0xff]
  %v1306 = vld [vmem:[#allocation2 + $0xd8] sm:$0xff]
  %1307 = vmatprep.subr.mxu0 %v352
  %1308 = vmatpush1.msra.mxu0 %v351
  %1309 = vmatprep.subr.mxu0 %v356
  %1310 = vmatpush1.msra.mxu0 %v355
  %1311 = vmatprep.subr.mxu0 %v360
  %1312 = vmatpush1.msra.mxu0 %v359
  %1313 = vmatprep.subr.mxu0 %v364
  %1314 = vmatpush1.msra.mxu0 %v363
  %1315 = vmatprep.subr.mxu0 %v368
  %1316 = vmatpush1.msra.mxu0 %v367
  %1317 = vmatprep.subr.mxu0 %v372
  %1318 = vmatpush1.msra.mxu0 %v371
  %1319 = vmatprep.subr.mxu0 %v376
  %1320 = vmatpush1.msra.mxu0 %v375
  %1321 = vmatprep.subr.mxu0 %v380
  %1322 = vmatpush1.msra.mxu0 %v379
  %1323 = vmatprep.subr.mxu0 %v384
  %1324 = vmatpush1.msra.mxu0 %v383
  %1325 = vmatprep.subr.mxu0 %v388
  %1326 = vmatpush1.msra.mxu0 %v387
  %1327 = vmatprep.subr.mxu0 %v392
  %1328 = vmatpush1.msra.mxu0 %v391
  %1329 = vmatprep.subr.mxu0 %v396
  %1330 = vmatpush1.msra.mxu0 %v395
  %1331 = vmatprep.subr.mxu0 %v400
  %1332 = vmatpush1.msra.mxu0 %v399
  %1333 = vmatprep.subr.mxu0 %v404
  %1334 = vmatpush1.msra.mxu0 %v403
  %1335 = vmatprep.subr.mxu0 %v408
  %1336 = vmatpush1.msra.mxu0 %v407
  %1337 = vmatprep.subr.mxu0 %v412
  %1338 = vmatpush1.msra.mxu0 %v411
  %1339 = vmatprep.subr.mxu0 0.0
  %1340 = vmatpush1.msra.mxu0 0.0
  %1341 = vmatprep.subr.mxu0 0.0
  %1342 = vmatpush1.msra.mxu0 0.0
  %1343 = vmatprep.subr.mxu0 0.0
  %1344 = vmatpush1.msra.mxu0 0.0
  %1345 = vmatprep.subr.mxu0 0.0
  %1346 = vmatpush1.msra.mxu0 0.0
  %1347 = vmatprep.subr.mxu0 0.0
  %1348 = vmatpush1.msra.mxu0 0.0
  %1349 = vmatprep.subr.mxu0 0.0
  %1350 = vmatpush1.msra.mxu0 0.0
  %1351 = vmatprep.subr.mxu0 0.0
  %1352 = vmatpush1.msra.mxu0 0.0
  %1353 = vmatprep.subr.mxu0 0.0
  %1354 = vmatpush1.msra.mxu0 0.0
  %1355 = vmatprep.subr.mxu0 0.0
  %1356 = vmatpush1.msra.mxu0 0.0
  %1357 = vmatprep.subr.mxu0 0.0
  %1358 = vmatpush1.msra.mxu0 0.0
  %1359 = vmatprep.subr.mxu0 0.0
  %1360 = vmatpush1.msra.mxu0 0.0
  %1361 = vmatprep.subr.mxu0 0.0
  %1362 = vmatpush1.msra.mxu0 0.0
  %1363 = vmatprep.subr.mxu0 0.0
  %1364 = vmatpush1.msra.mxu0 0.0
  %1365 = vmatprep.subr.mxu0 0.0
  %1366 = vmatpush1.msra.mxu0 0.0
  %1367 = vmatprep.subr.mxu0 0.0
  %1368 = vmatpush1.msra.mxu0 0.0
  %1369 = vmatprep.subr.mxu0 0.0
  %1370 = vmatpush1.msra.mxu0 0.0
  %1371 = vmatprep.mubr.f32.mxu0 0.0
  %1372 = vmatmul.mubr.f32.gmra.mrb[0].mxu0 %v1301
  %v1373 = vpop.f32.mrb[0].mxu0
  %v1374 = vadd.f32 %v1303, %v1373
  %v1375 = vpop.f32.mrb[0].mxu0
  %v1376 = vadd.f32 %v1304, %v1375
  %1377 = vdwg.mxu0
  %1378 = vmatprep.subr.mxu0 %v354
  %1379 = vmatpush1.msra.mxu0 %v353
  %1380 = vmatprep.subr.mxu0 %v358
  %1381 = vmatpush1.msra.mxu0 %v357
  %1382 = vmatprep.subr.mxu0 %v362
  %1383 = vmatpush1.msra.mxu0 %v361
  %1384 = vmatprep.subr.mxu0 %v366
  %1385 = vmatpush1.msra.mxu0 %v365
  %1386 = vmatprep.subr.mxu0 %v370
  %1387 = vmatpush1.msra.mxu0 %v369
  %1388 = vmatprep.subr.mxu0 %v374
  %1389 = vmatpush1.msra.mxu0 %v373
  %1390 = vmatprep.subr.mxu0 %v378
  %1391 = vmatpush1.msra.mxu0 %v377
  %1392 = vmatprep.subr.mxu0 %v382
  %1393 = vmatpush1.msra.mxu0 %v381
  %1394 = vmatprep.subr.mxu0 %v386
  %1395 = vmatpush1.msra.mxu0 %v385
  %1396 = vmatprep.subr.mxu0 %v390
  %1397 = vmatpush1.msra.mxu0 %v389
  %1398 = vmatprep.subr.mxu0 %v394
  %1399 = vmatpush1.msra.mxu0 %v393
  %1400 = vmatprep.subr.mxu0 %v398
  %1401 = vmatpush1.msra.mxu0 %v397
  %1402 = vmatprep.subr.mxu0 %v402
  %1403 = vmatpush1.msra.mxu0 %v401
  %1404 = vmatprep.subr.mxu0 %v406
  %1405 = vmatpush1.msra.mxu0 %v405
  %1406 = vmatprep.subr.mxu0 %v410
  %1407 = vmatpush1.msra.mxu0 %v409
  %1408 = vmatprep.subr.mxu0 %v414
  %1409 = vmatpush1.msra.mxu0 %v413
  %1410 = vmatprep.subr.mxu0 0.0
  %1411 = vmatpush1.msra.mxu0 0.0
  %1412 = vmatprep.subr.mxu0 0.0
  %1413 = vmatpush1.msra.mxu0 0.0
  %1414 = vmatprep.subr.mxu0 0.0
  %1415 = vmatpush1.msra.mxu0 0.0
  %1416 = vmatprep.subr.mxu0 0.0
  %1417 = vmatpush1.msra.mxu0 0.0
  %1418 = vmatprep.subr.mxu0 0.0
  %1419 = vmatpush1.msra.mxu0 0.0
  %1420 = vmatprep.subr.mxu0 0.0
  %1421 = vmatpush1.msra.mxu0 0.0
  %1422 = vmatprep.subr.mxu0 0.0
  %1423 = vmatpush1.msra.mxu0 0.0
  %1424 = vmatprep.subr.mxu0 0.0
  %1425 = vmatpush1.msra.mxu0 0.0
  %1426 = vmatprep.subr.mxu0 0.0
  %1427 = vmatpush1.msra.mxu0 0.0
  %1428 = vmatprep.subr.mxu0 0.0
  %1429 = vmatpush1.msra.mxu0 0.0
  %1430 = vmatprep.subr.mxu0 0.0
  %1431 = vmatpush1.msra.mxu0 0.0
  %1432 = vmatprep.subr.mxu0 0.0
  %1433 = vmatpush1.msra.mxu0 0.0
  %1434 = vmatprep.subr.mxu0 0.0
  %1435 = vmatpush1.msra.mxu0 0.0
  %1436 = vmatprep.subr.mxu0 0.0
  %1437 = vmatpush1.msra.mxu0 0.0
  %1438 = vmatprep.subr.mxu0 0.0
  %1439 = vmatpush1.msra.mxu0 0.0
  %1440 = vmatprep.subr.mxu0 0.0
  %1441 = vmatpush1.msra.mxu0 0.0
  %1442 = vmatprep.mubr.f32.mxu0 0.0
  %1443 = vmatmul.mubr.f32.gmra.mrb[0].mxu0 %v1301
  %v1444 = vpop.f32.mrb[0].mxu0
  %v1445 = vadd.f32 %v1305, %v1444
  %v1446 = vpop.f32.mrb[0].mxu0
  %v1447 = vadd.f32 %v1306, %v1446
  %1448 = vdwg.mxu0
  %v1449 = vxor.u32 %v1374, 2147483648
  %v1450 = vxor.u32 %v1376, 2147483648
  %v1451 = vxor.u32 %v1445, 2147483648
  %v1452 = vmul.f32 %v1449, 1.442695
  %v1453 = vpow.pop %v1452
  %v1454 = vmul.f32 %v1450, 1.442695
  %v1455 = vpow.pop %v1454
  %v1456 = vmul.f32 %v1451, 1.442695
  %v1457 = vpow.pop %v1456
  %v1458 = vadd.f32 %v1453, 1.0
  %v1459 = vadd.f32 %v1455, 1.0
  %v1460 = vadd.f32 %v1457, 1.0
  %v1461 = vrcp.pop %v1458
  %v1462 = vmul.f32 1.0, %v1461
  %v1463 = vrcp.pop %v1459
  %v1464 = vmul.f32 1.0, %v1463
  %v1465 = vrcp.pop %v1460
  %v1466 = vmul.f32 1.0, %v1465
  %v1467 = vtanh.pop %v1447
  %v1468 = vmul.f32 %v1464, %v1299
  %v1469 = vmul.f32 %v1462, %v1467
  %v1470 = vadd.f32 %v1468, %v1469
  %v1471 = vtanh.pop %v1470
  %v1472 = vmul.f32 %v1466, %v1471
  %1473 = vst [vmem:[#allocation3 + $0x28] sm:$0xff] %v1472
  %v1474 = vld [vmem:[#allocation2 + $0xe0] sm:$0xff]
  %v1475 = vld [vmem:[#allocation2 + $0xe8] sm:$0xff]
  %v1476 = vld [vmem:[#allocation2 + $0xf0] sm:$0xff]
  %v1477 = vld [vmem:[#allocation2 + $0xf8] sm:$0xff]
  %1478 = vmatprep.subr.mxu0 %v352
  %1479 = vmatpush1.msra.mxu0 %v351
  %1480 = vmatprep.subr.mxu0 %v356
  %1481 = vmatpush1.msra.mxu0 %v355
  %1482 = vmatprep.subr.mxu0 %v360
  %1483 = vmatpush1.msra.mxu0 %v359
  %1484 = vmatprep.subr.mxu0 %v364
  %1485 = vmatpush1.msra.mxu0 %v363
  %1486 = vmatprep.subr.mxu0 %v368
  %1487 = vmatpush1.msra.mxu0 %v367
  %1488 = vmatprep.subr.mxu0 %v372
  %1489 = vmatpush1.msra.mxu0 %v371
  %1490 = vmatprep.subr.mxu0 %v376
  %1491 = vmatpush1.msra.mxu0 %v375
  %1492 = vmatprep.subr.mxu0 %v380
  %1493 = vmatpush1.msra.mxu0 %v379
  %1494 = vmatprep.subr.mxu0 %v384
  %1495 = vmatpush1.msra.mxu0 %v383
  %1496 = vmatprep.subr.mxu0 %v388
  %1497 = vmatpush1.msra.mxu0 %v387
  %1498 = vmatprep.subr.mxu0 %v392
  %1499 = vmatpush1.msra.mxu0 %v391
  %1500 = vmatprep.subr.mxu0 %v396
  %1501 = vmatpush1.msra.mxu0 %v395
  %1502 = vmatprep.subr.mxu0 %v400
  %1503 = vmatpush1.msra.mxu0 %v399
  %1504 = vmatprep.subr.mxu0 %v404
  %1505 = vmatpush1.msra.mxu0 %v403
  %1506 = vmatprep.subr.mxu0 %v408
  %1507 = vmatpush1.msra.mxu0 %v407
  %1508 = vmatprep.subr.mxu0 %v412
  %1509 = vmatpush1.msra.mxu0 %v411
  %1510 = vmatprep.subr.mxu0 0.0
  %1511 = vmatpush1.msra.mxu0 0.0
  %1512 = vmatprep.subr.mxu0 0.0
  %1513 = vmatpush1.msra.mxu0 0.0
  %1514 = vmatprep.subr.mxu0 0.0
  %1515 = vmatpush1.msra.mxu0 0.0
  %1516 = vmatprep.subr.mxu0 0.0
  %1517 = vmatpush1.msra.mxu0 0.0
  %1518 = vmatprep.subr.mxu0 0.0
  %1519 = vmatpush1.msra.mxu0 0.0
  %1520 = vmatprep.subr.mxu0 0.0
  %1521 = vmatpush1.msra.mxu0 0.0
  %1522 = vmatprep.subr.mxu0 0.0
  %1523 = vmatpush1.msra.mxu0 0.0
  %1524 = vmatprep.subr.mxu0 0.0
  %1525 = vmatpush1.msra.mxu0 0.0
  %1526 = vmatprep.subr.mxu0 0.0
  %1527 = vmatpush1.msra.mxu0 0.0
  %1528 = vmatprep.subr.mxu0 0.0
  %1529 = vmatpush1.msra.mxu0 0.0
  %1530 = vmatprep.subr.mxu0 0.0
  %1531 = vmatpush1.msra.mxu0 0.0
  %1532 = vmatprep.subr.mxu0 0.0
  %1533 = vmatpush1.msra.mxu0 0.0
  %1534 = vmatprep.subr.mxu0 0.0
  %1535 = vmatpush1.msra.mxu0 0.0
  %1536 = vmatprep.subr.mxu0 0.0
  %1537 = vmatpush1.msra.mxu0 0.0
  %1538 = vmatprep.subr.mxu0 0.0
  %1539 = vmatpush1.msra.mxu0 0.0
  %1540 = vmatprep.subr.mxu0 0.0
  %1541 = vmatpush1.msra.mxu0 0.0
  %1542 = vmatprep.mubr.f32.mxu0 0.0
  %1543 = vmatmul.mubr.f32.gmra.mrb[0].mxu0 %v1472
  %v1544 = vpop.f32.mrb[0].mxu0
  %v1545 = vadd.f32 %v1474, %v1544
  %v1546 = vpop.f32.mrb[0].mxu0
  %v1547 = vadd.f32 %v1475, %v1546
  %1548 = vdwg.mxu0
  %1549 = vmatprep.subr.mxu0 %v354
  %1550 = vmatpush1.msra.mxu0 %v353
  %1551 = vmatprep.subr.mxu0 %v358
  %1552 = vmatpush1.msra.mxu0 %v357
  %1553 = vmatprep.subr.mxu0 %v362
  %1554 = vmatpush1.msra.mxu0 %v361
  %1555 = vmatprep.subr.mxu0 %v366
  %1556 = vmatpush1.msra.mxu0 %v365
  %1557 = vmatprep.subr.mxu0 %v370
  %1558 = vmatpush1.msra.mxu0 %v369
  %1559 = vmatprep.subr.mxu0 %v374
  %1560 = vmatpush1.msra.mxu0 %v373
  %1561 = vmatprep.subr.mxu0 %v378
  %1562 = vmatpush1.msra.mxu0 %v377
  %1563 = vmatprep.subr.mxu0 %v382
  %1564 = vmatpush1.msra.mxu0 %v381
  %1565 = vmatprep.subr.mxu0 %v386
  %1566 = vmatpush1.msra.mxu0 %v385
  %1567 = vmatprep.subr.mxu0 %v390
  %1568 = vmatpush1.msra.mxu0 %v389
  %1569 = vmatprep.subr.mxu0 %v394
  %1570 = vmatpush1.msra.mxu0 %v393
  %1571 = vmatprep.subr.mxu0 %v398
  %1572 = vmatpush1.msra.mxu0 %v397
  %1573 = vmatprep.subr.mxu0 %v402
  %1574 = vmatpush1.msra.mxu0 %v401
  %1575 = vmatprep.subr.mxu0 %v406
  %1576 = vmatpush1.msra.mxu0 %v405
  %1577 = vmatprep.subr.mxu0 %v410
  %1578 = vmatpush1.msra.mxu0 %v409
  %1579 = vmatprep.subr.mxu0 %v414
  %1580 = vmatpush1.msra.mxu0 %v413
  %1581 = vmatprep.subr.mxu0 0.0
  %1582 = vmatpush1.msra.mxu0 0.0
  %1583 = vmatprep.subr.mxu0 0.0
  %1584 = vmatpush1.msra.mxu0 0.0
  %1585 = vmatprep.subr.mxu0 0.0
  %1586 = vmatpush1.msra.mxu0 0.0
  %1587 = vmatprep.subr.mxu0 0.0
  %1588 = vmatpush1.msra.mxu0 0.0
  %1589 = vmatprep.subr.mxu0 0.0
  %1590 = vmatpush1.msra.mxu0 0.0
  %1591 = vmatprep.subr.mxu0 0.0
  %1592 = vmatpush1.msra.mxu0 0.0
  %1593 = vmatprep.subr.mxu0 0.0
  %1594 = vmatpush1.msra.mxu0 0.0
  %1595 = vmatprep.subr.mxu0 0.0
  %1596 = vmatpush1.msra.mxu0 0.0
  %1597 = vmatprep.subr.mxu0 0.0
  %1598 = vmatpush1.msra.mxu0 0.0
  %1599 = vmatprep.subr.mxu0 0.0
  %1600 = vmatpush1.msra.mxu0 0.0
  %1601 = vmatprep.subr.mxu0 0.0
  %1602 = vmatpush1.msra.mxu0 0.0
  %1603 = vmatprep.subr.mxu0 0.0
  %1604 = vmatpush1.msra.mxu0 0.0
  %1605 = vmatprep.subr.mxu0 0.0
  %1606 = vmatpush1.msra.mxu0 0.0
  %1607 = vmatprep.subr.mxu0 0.0
  %1608 = vmatpush1.msra.mxu0 0.0
  %1609 = vmatprep.subr.mxu0 0.0
  %1610 = vmatpush1.msra.mxu0 0.0
  %1611 = vmatprep.subr.mxu0 0.0
  %1612 = vmatpush1.msra.mxu0 0.0
  %1613 = vmatprep.mubr.f32.mxu0 0.0
  %1614 = vmatmul.mubr.f32.gmra.mrb[0].mxu0 %v1472
  %v1615 = vpop.f32.mrb[0].mxu0
  %v1616 = vadd.f32 %v1476, %v1615
  %v1617 = vpop.f32.mrb[0].mxu0
  %v1618 = vadd.f32 %v1477, %v1617
  %1619 = vdwg.mxu0
  %v1620 = vxor.u32 %v1545, 2147483648
  %v1621 = vxor.u32 %v1547, 2147483648
  %v1622 = vxor.u32 %v1616, 2147483648
  %v1623 = vmul.f32 %v1620, 1.442695
  %v1624 = vpow.pop %v1623
  %v1625 = vmul.f32 %v1621, 1.442695
  %v1626 = vpow.pop %v1625
  %v1627 = vmul.f32 %v1622, 1.442695
  %v1628 = vpow.pop %v1627
  %v1629 = vadd.f32 %v1624, 1.0
  %v1630 = vadd.f32 %v1626, 1.0
  %v1631 = vadd.f32 %v1628, 1.0
  %v1632 = vrcp.pop %v1629
  %v1633 = vmul.f32 1.0, %v1632
  %v1634 = vrcp.pop %v1630
  %v1635 = vmul.f32 1.0, %v1634
  %v1636 = vrcp.pop %v1631
  %v1637 = vmul.f32 1.0, %v1636
  %v1638 = vtanh.pop %v1618
  %v1639 = vmul.f32 %v1635, %v1470
  %v1640 = vmul.f32 %v1633, %v1638
  %v1641 = vadd.f32 %v1639, %v1640
  %v1642 = vtanh.pop %v1641
  %v1643 = vmul.f32 %v1637, %v1642
  %1644 = vst [vmem:[#allocation3 + $0x30] sm:$0xff] %v1643
  %1645 = vmatprep.subr.mxu0 %v352
  %1646 = vmatpush1.msra.mxu0 %v351
  %1647 = vmatprep.subr.mxu0 %v356
  %1648 = vmatpush1.msra.mxu0 %v355
  %1649 = vmatprep.subr.mxu0 %v360
  %1650 = vmatpush1.msra.mxu0 %v359
  %1651 = vmatprep.subr.mxu0 %v364
  %1652 = vmatpush1.msra.mxu0 %v363
  %1653 = vmatprep.subr.mxu0 %v368
  %1654 = vmatpush1.msra.mxu0 %v367
  %1655 = vmatprep.subr.mxu0 %v372
  %1656 = vmatpush1.msra.mxu0 %v371
  %1657 = vmatprep.subr.mxu0 %v376
  %1658 = vmatpush1.msra.mxu0 %v375
  %1659 = vmatprep.subr.mxu0 %v380
  %1660 = vmatpush1.msra.mxu0 %v379
  %1661 = vmatprep.subr.mxu0 %v384
  %1662 = vmatpush1.msra.mxu0 %v383
  %1663 = vmatprep.subr.mxu0 %v388
  %1664 = vmatpush1.msra.mxu0 %v387
  %1665 = vmatprep.subr.mxu0 %v392
  %1666 = vmatpush1.msra.mxu0 %v391
  %1667 = vmatprep.subr.mxu0 %v396
  %1668 = vmatpush1.msra.mxu0 %v395
  %1669 = vmatprep.subr.mxu0 %v400
  %1670 = vmatpush1.msra.mxu0 %v399
  %1671 = vmatprep.subr.mxu0 %v404
  %1672 = vmatpush1.msra.mxu0 %v403
  %1673 = vmatprep.subr.mxu0 %v408
  %1674 = vmatpush1.msra.mxu0 %v407
  %1675 = vmatprep.subr.mxu0 %v412
  %1676 = vmatpush1.msra.mxu0 %v411
  %1677 = vmatprep.subr.mxu0 0.0
  %1678 = vmatpush1.msra.mxu0 0.0
  %1679 = vmatprep.subr.mxu0 0.0
  %1680 = vmatpush1.msra.mxu0 0.0
  %1681 = vmatprep.subr.mxu0 0.0
  %1682 = vmatpush1.msra.mxu0 0.0
  %1683 = vmatprep.subr.mxu0 0.0
  %1684 = vmatpush1.msra.mxu0 0.0
  %1685 = vmatprep.subr.mxu0 0.0
  %1686 = vmatpush1.msra.mxu0 0.0
  %1687 = vmatprep.subr.mxu0 0.0
  %1688 = vmatpush1.msra.mxu0 0.0
  %1689 = vmatprep.subr.mxu0 0.0
  %1690 = vmatpush1.msra.mxu0 0.0
  %1691 = vmatprep.subr.mxu0 0.0
  %1692 = vmatpush1.msra.mxu0 0.0
  %1693 = vmatprep.subr.mxu0 0.0
  %1694 = vmatpush1.msra.mxu0 0.0
  %1695 = vmatprep.subr.mxu0 0.0
  %1696 = vmatpush1.msra.mxu0 0.0
  %1697 = vmatprep.subr.mxu0 0.0
  %1698 = vmatpush1.msra.mxu0 0.0
  %1699 = vmatprep.subr.mxu0 0.0
  %1700 = vmatpush1.msra.mxu0 0.0
  %1701 = vmatprep.subr.mxu0 0.0
  %1702 = vmatpush1.msra.mxu0 0.0
  %1703 = vmatprep.subr.mxu0 0.0
  %1704 = vmatpush1.msra.mxu0 0.0
  %1705 = vmatprep.subr.mxu0 0.0
  %1706 = vmatpush1.msra.mxu0 0.0
  %1707 = vmatprep.subr.mxu0 0.0
  %1708 = vmatpush1.msra.mxu0 0.0
  %1709 = vmatprep.mubr.f32.mxu0 0.0
  %1710 = vmatmul.mubr.f32.gmra.mrb[0].mxu0 %v1643
  %v1711 = vpop.f32.mrb[0].mxu0
  %v1712 = vadd.f32 %v38, %v1711
  %v1713 = vpop.f32.mrb[0].mxu0
  %v1714 = vadd.f32 %v42, %v1713
  %1715 = vdwg.mxu0
  %1716 = vmatprep.subr.mxu0 %v354
  %1717 = vmatpush1.msra.mxu0 %v353
  %1718 = vmatprep.subr.mxu0 %v358
  %1719 = vmatpush1.msra.mxu0 %v357
  %1720 = vmatprep.subr.mxu0 %v362
  %1721 = vmatpush1.msra.mxu0 %v361
  %1722 = vmatprep.subr.mxu0 %v366
  %1723 = vmatpush1.msra.mxu0 %v365
  %1724 = vmatprep.subr.mxu0 %v370
  %1725 = vmatpush1.msra.mxu0 %v369
  %1726 = vmatprep.subr.mxu0 %v374
  %1727 = vmatpush1.msra.mxu0 %v373
  %1728 = vmatprep.subr.mxu0 %v378
  %1729 = vmatpush1.msra.mxu0 %v377
  %1730 = vmatprep.subr.mxu0 %v382
  %1731 = vmatpush1.msra.mxu0 %v381
  %1732 = vmatprep.subr.mxu0 %v386
  %1733 = vmatpush1.msra.mxu0 %v385
  %1734 = vmatprep.subr.mxu0 %v390
  %1735 = vmatpush1.msra.mxu0 %v389
  %1736 = vmatprep.subr.mxu0 %v394
  %1737 = vmatpush1.msra.mxu0 %v393
  %1738 = vmatprep.subr.mxu0 %v398
  %1739 = vmatpush1.msra.mxu0 %v397
  %1740 = vmatprep.subr.mxu0 %v402
  %1741 = vmatpush1.msra.mxu0 %v401
  %1742 = vmatprep.subr.mxu0 %v406
  %1743 = vmatpush1.msra.mxu0 %v405
  %1744 = vmatprep.subr.mxu0 %v410
  %1745 = vmatpush1.msra.mxu0 %v409
  %1746 = vmatprep.subr.mxu0 %v414
  %1747 = vmatpush1.msra.mxu0 %v413
  %1748 = vmatprep.subr.mxu0 0.0
  %1749 = vmatpush1.msra.mxu0 0.0
  %1750 = vmatprep.subr.mxu0 0.0
  %1751 = vmatpush1.msra.mxu0 0.0
  %1752 = vmatprep.subr.mxu0 0.0
  %1753 = vmatpush1.msra.mxu0 0.0
  %1754 = vmatprep.subr.mxu0 0.0
  %1755 = vmatpush1.msra.mxu0 0.0
  %1756 = vmatprep.subr.mxu0 0.0
  %1757 = vmatpush1.msra.mxu0 0.0
  %1758 = vmatprep.subr.mxu0 0.0
  %1759 = vmatpush1.msra.mxu0 0.0
  %1760 = vmatprep.subr.mxu0 0.0
  %1761 = vmatpush1.msra.mxu0 0.0
  %1762 = vmatprep.subr.mxu0 0.0
  %1763 = vmatpush1.msra.mxu0 0.0
  %1764 = vmatprep.subr.mxu0 0.0
  %1765 = vmatpush1.msra.mxu0 0.0
  %1766 = vmatprep.subr.mxu0 0.0
  %1767 = vmatpush1.msra.mxu0 0.0
  %1768 = vmatprep.subr.mxu0 0.0
  %1769 = vmatpush1.msra.mxu0 0.0
  %1770 = vmatprep.subr.mxu0 0.0
  %1771 = vmatpush1.msra.mxu0 0.0
  %1772 = vmatprep.subr.mxu0 0.0
  %1773 = vmatpush1.msra.mxu0 0.0
  %1774 = vmatprep.subr.mxu0 0.0
  %1775 = vmatpush1.msra.mxu0 0.0
  %1776 = vmatprep.subr.mxu0 0.0
  %1777 = vmatpush1.msra.mxu0 0.0
  %1778 = vmatprep.subr.mxu0 0.0
  %1779 = vmatpush1.msra.mxu0 0.0
  %1780 = vmatprep.mubr.f32.mxu0 0.0
  %1781 = vmatmul.mubr.f32.gmra.mrb[0].mxu0 %v1643
  %v1782 = vpop.f32.mrb[0].mxu0
  %v1783 = vadd.f32 %v46, %v1782
  %v1784 = vpop.f32.mrb[0].mxu0
  %v1785 = vadd.f32 %v50, %v1784
  %1786 = vdwg.mxu0
  %v1787 = vxor.u32 %v1712, 2147483648
  %v1788 = vxor.u32 %v1714, 2147483648
  %v1789 = vxor.u32 %v1783, 2147483648
  %v1790 = vmul.f32 %v1787, 1.442695
  %v1791 = vpow.pop %v1790
  %v1792 = vmul.f32 %v1788, 1.442695
  %v1793 = vpow.pop %v1792
  %v1794 = vmul.f32 %v1789, 1.442695
  %v1795 = vpow.pop %v1794
  %v1796 = vadd.f32 %v1791, 1.0
  %v1797 = vadd.f32 %v1793, 1.0
  %v1798 = vadd.f32 %v1795, 1.0
  %v1799 = vrcp.pop %v1796
  %v1800 = vmul.f32 1.0, %v1799
  %v1801 = vrcp.pop %v1797
  %v1802 = vmul.f32 1.0, %v1801
  %v1803 = vrcp.pop %v1798
  %v1804 = vmul.f32 1.0, %v1803
  %v1805 = vtanh.pop %v1785
  %v1806 = vmul.f32 %v1802, %v1641
  %v1807 = vmul.f32 %v1800, %v1805
  %v1808 = vadd.f32 %v1806, %v1807
  %v1809 = vtanh.pop %v1808
  %v1810 = vmul.f32 %v1804, %v1809
  %1811 = vst [vmem:[#allocation3 + $0x38] sm:$0xff] %v1810
  %v1812 = vld [vmem:[#allocation3] sm:$0xff]
  %v1813 = vld [vmem:[#allocation3 + $0x8] sm:$0xff]
  %v1814 = vld [vmem:[#allocation3 + $0x10] sm:$0xff]
  %v1815 = vld [vmem:[#allocation3 + $0x18] sm:$0xff]
  %v1816 = vld [vmem:[#allocation3 + $0x20] sm:$0xff]
  %v1817 = vld [vmem:[#allocation3 + $0x28] sm:$0xff]
  %v1818 = vld [vmem:[#allocation3 + $0x30] sm:$0xff]
  %v1819 = vld [vmem:[#allocation3 + $0x38] sm:$0xff]
  %v1820 = vld [vmem:[%s4] sm:$0xff]
  %v1821 = vld [vmem:[%s4 + $0x8] sm:$0xff]
  %v1822 = vld [vmem:[%s4 + $0x10] sm:$0xff]
  %v1823 = vld [vmem:[%s4 + $0x18] sm:$0xff]
  %v1824 = vld [vmem:[%s4 + $0x20] sm:$0xff]
  %v1825 = vld [vmem:[%s4 + $0x28] sm:$0xff]
  %v1826 = vld [vmem:[%s4 + $0x30] sm:$0xff]
  %v1827 = vld [vmem:[%s4 + $0x38] sm:$0xff]
  %v1828 = vld [vmem:[%s4 + $0x40] sm:$0xff]
  %v1829 = vld [vmem:[%s4 + $0x48] sm:$0xff]
  %v1830 = vld [vmem:[%s4 + $0x50] sm:$0xff]
  %v1831 = vld [vmem:[%s4 + $0x58] sm:$0xff]
  %v1832 = vld [vmem:[%s4 + $0x60] sm:$0xff]
  %v1833 = vld [vmem:[%s4 + $0x68] sm:$0xff]
  %v1834 = vld [vmem:[%s4 + $0x70] sm:$0xff]
  %v1835 = vld [vmem:[%s4 + $0x78] sm:$0xff]
  %v1836 = vld [vmem:[%s5] sm:$0x1]
  %v1838 = vlaneseq
  %v1839 = vshrl.u32 %v1838, 7
  %v1840 = vsub.s32 0, %v1839
  %v1841 = vrot.slane %v1836, %v1840
  %1843 = vmatprep.subr.mxu0 0.0
  %1844 = vmatpush1.msra.mxu0 %v1820
  %1845 = vmatprep.subr.mxu0 0.0
  %1846 = vmatpush1.msra.mxu0 %v1821
  %1847 = vmatprep.subr.mxu0 0.0
  %1848 = vmatpush1.msra.mxu0 %v1822
  %1849 = vmatprep.subr.mxu0 0.0
  %1850 = vmatpush1.msra.mxu0 %v1823
  %1851 = vmatprep.subr.mxu0 0.0
  %1852 = vmatpush1.msra.mxu0 %v1824
  %1853 = vmatprep.subr.mxu0 0.0
  %1854 = vmatpush1.msra.mxu0 %v1825
  %1855 = vmatprep.subr.mxu0 0.0
  %1856 = vmatpush1.msra.mxu0 %v1826
  %1857 = vmatprep.subr.mxu0 0.0
  %1858 = vmatpush1.msra.mxu0 %v1827
  %1859 = vmatprep.subr.mxu0 0.0
  %1860 = vmatpush1.msra.mxu0 %v1828
  %1861 = vmatprep.subr.mxu0 0.0
  %1862 = vmatpush1.msra.mxu0 %v1829
  %1863 = vmatprep.subr.mxu0 0.0
  %1864 = vmatpush1.msra.mxu0 %v1830
  %1865 = vmatprep.subr.mxu0 0.0
  %1866 = vmatpush1.msra.mxu0 %v1831
  %1867 = vmatprep.subr.mxu0 0.0
  %1868 = vmatpush1.msra.mxu0 %v1832
  %1869 = vmatprep.subr.mxu0 0.0
  %1870 = vmatpush1.msra.mxu0 %v1833
  %1871 = vmatprep.subr.mxu0 0.0
  %1872 = vmatpush1.msra.mxu0 %v1834
  %1873 = vmatprep.subr.mxu0 0.0
  %1874 = vmatpush1.msra.mxu0 %v1835
  %1875 = vmatprep.subr.mxu0 0.0
  %1876 = vmatpush1.msra.mxu0 0.0
  %1877 = vmatprep.subr.mxu0 0.0
  %1878 = vmatpush1.msra.mxu0 0.0
  %1879 = vmatprep.subr.mxu0 0.0
  %1880 = vmatpush1.msra.mxu0 0.0
  %1881 = vmatprep.subr.mxu0 0.0
  %1882 = vmatpush1.msra.mxu0 0.0
  %1883 = vmatprep.subr.mxu0 0.0
  %1884 = vmatpush1.msra.mxu0 0.0
  %1885 = vmatprep.subr.mxu0 0.0
  %1886 = vmatpush1.msra.mxu0 0.0
  %1887 = vmatprep.subr.mxu0 0.0
  %1888 = vmatpush1.msra.mxu0 0.0
  %1889 = vmatprep.subr.mxu0 0.0
  %1890 = vmatpush1.msra.mxu0 0.0
  %1891 = vmatprep.subr.mxu0 0.0
  %1892 = vmatpush1.msra.mxu0 0.0
  %1893 = vmatprep.subr.mxu0 0.0
  %1894 = vmatpush1.msra.mxu0 0.0
  %1895 = vmatprep.subr.mxu0 0.0
  %1896 = vmatpush1.msra.mxu0 0.0
  %1897 = vmatprep.subr.mxu0 0.0
  %1898 = vmatpush1.msra.mxu0 0.0
  %1899 = vmatprep.subr.mxu0 0.0
  %1900 = vmatpush1.msra.mxu0 0.0
  %1901 = vmatprep.subr.mxu0 0.0
  %1902 = vmatpush1.msra.mxu0 0.0
  %1903 = vmatprep.subr.mxu0 0.0
  %1904 = vmatpush1.msra.mxu0 0.0
  %1905 = vmatprep.subr.mxu0 0.0
  %1906 = vmatpush1.msra.mxu0 0.0
  %1907 = vmatprep.mubr.f32.mxu0 0.0
  %1908 = vmatmul.mubr.f32.gmra.mrb[0].mxu0 %v1812
  %v1909 = vpop.f32.mrb[0].mxu0
  %v1910 = vadd.f32 %v1841, %v1909
  %v1911 = vpop.f32.mrb[0].mxu0
  %1912 = vmatprep.mubr.f32.mxu0 0.0
  %1913 = vmatmul.mubr.f32.gmra.mrb[0].mxu0 %v1813
  %v1914 = vpop.f32.mrb[0].mxu0
  %v1915 = vadd.f32 %v1841, %v1914
  %v1916 = vpop.f32.mrb[0].mxu0
  %1917 = vmatprep.mubr.f32.mxu0 0.0
  %1918 = vmatmul.mubr.f32.gmra.mrb[0].mxu0 %v1814
  %v1919 = vpop.f32.mrb[0].mxu0
  %v1920 = vadd.f32 %v1841, %v1919
  %v1921 = vpop.f32.mrb[0].mxu0
  %1922 = vmatprep.mubr.f32.mxu0 0.0
  %1923 = vmatmul.mubr.f32.gmra.mrb[0].mxu0 %v1815
  %v1924 = vpop.f32.mrb[0].mxu0
  %v1925 = vadd.f32 %v1841, %v1924
  %v1926 = vpop.f32.mrb[0].mxu0
  %1927 = vmatprep.mubr.f32.mxu0 0.0
  %1928 = vmatmul.mubr.f32.gmra.mrb[0].mxu0 %v1816
  %v1929 = vpop.f32.mrb[0].mxu0
  %v1930 = vadd.f32 %v1841, %v1929
  %v1931 = vpop.f32.mrb[0].mxu0
  %1932 = vmatprep.mubr.f32.mxu0 0.0
  %1933 = vmatmul.mubr.f32.gmra.mrb[0].mxu0 %v1817
  %v1934 = vpop.f32.mrb[0].mxu0
  %v1935 = vadd.f32 %v1841, %v1934
  %v1936 = vpop.f32.mrb[0].mxu0
  %1937 = vmatprep.mubr.f32.mxu0 0.0
  %1938 = vmatmul.mubr.f32.gmra.mrb[0].mxu0 %v1818
  %v1939 = vpop.f32.mrb[0].mxu0
  %v1940 = vadd.f32 %v1841, %v1939
  %v1941 = vpop.f32.mrb[0].mxu0
  %1942 = vmatprep.mubr.f32.mxu0 0.0
  %1943 = vmatmul.mubr.f32.gmra.mrb[0].mxu0 %v1819
  %v1944 = vpop.f32.mrb[0].mxu0
  %v1945 = vadd.f32 %v1841, %v1944
  %v1946 = vpop.f32.mrb[0].mxu0
  %1947 = vdwg.mxu0
  %1948 = vst [vmem:[%s6] sm:$0xff] %v1910
  %1949 = vst [vmem:[%s6 + $0x8] sm:$0xff] %v1915
  %1950 = vst [vmem:[%s6 + $0x10] sm:$0xff] %v1920
  %1951 = vst [vmem:[%s6 + $0x18] sm:$0xff] %v1925
  %1952 = vst [vmem:[%s6 + $0x20] sm:$0xff] %v1930
  %1953 = vst [vmem:[%s6 + $0x28] sm:$0xff] %v1935
  %1954 = vst [vmem:[%s6 + $0x30] sm:$0xff] %v1940
  %1955 = vst [vmem:[%s6 + $0x38] sm:$0xff] %v1945
  // Predicated region
  $region26: #{lstm_forward.1} parent=0 // pred_check
    _
  $region27: #{lstm_forward.1} parent=0 // pred_check_branch
    %1957 = sbr.rel (0) target = $region29
  $region28: #{lstm_forward.1} parent=0 // pred_region
    _
  $region29: #{lstm_forward.1} parent=0 // pred_fallthru
    _
  // Predicated region
  $region30: #{lstm_forward.1} parent=0 // pred_check
    _
  $region31: #{lstm_forward.1} parent=0 // pred_check_branch
    %1959 = sbr.rel (0) target = $region33
  $region32: #{lstm_forward.1} parent=0 // pred_region
    _
  $region33: #{lstm_forward.1} parent=0 // pred_fallthru
    _

</llo_original>
